<compile_context>
chip_gen: v5e
topology: v5e:2x2
jax: 0.10.0
libtpu: 0.0.40
codegen_flags: <defaults>
</compile_context>

<pallas_src>
import functools

import jax
import jax.numpy as jnp
from jax.experimental import pallas as pl
from jax.experimental.pallas import tpu as pltpu


def _round_up(x, m):
    return ((x + m - 1) // m) * m


# ----------------------------------------------------------------------------
# Pallas kernel: one tile of TB (B*T)-rows; the per-action head runs as
# block-diagonal matmuls over the packed (TB, A*F) lane layout.
# ----------------------------------------------------------------------------
def _decision_kernel(sae_ref, goal_ref, ht_ref,
                     wf_ref, bf_ref, w1h_ref, w1x_ref, b1_ref,
                     tmat_ref, w1bd_ref, w2bd_ref, b2t_ref,
                     w3bd_ref, b3t_ref, segb_ref,
                     out_ref):
    f32 = jnp.float32
    F = w1x_ref.shape[0]                 # feature size
    AF = sae_ref.shape[-1]               # action_size * feature_size
    A = AF // F
    NO = out_ref.shape[-1] // A          # padded atoms per action (64)

    goal_t = goal_ref[...]               # (TB, L)
    ht_t = ht_ref[...]                   # (TB, F)
    sae_t = sae_ref[...]                 # (TB, A*F) packed, native layout

    # ---- per-(B,T) prologue: fused FiLM projection  [g1 | g2 | b1 | b2] -----
    film = jnp.dot(goal_t, wf_ref[...], preferred_element_type=f32) + bf_ref[...]
    g1p = film[:, 0 * F:1 * F] + 1.0
    g2p = film[:, 1 * F:2 * F] + 1.0
    be1 = film[:, 2 * F:3 * F]
    be2 = film[:, 3 * F:4 * F]
    # FiLM1+res then FiLM2+res  ==  gain * sae + bias   (per bt, per action)
    gain = g1p * g2p                                            # (TB, F)
    bias = g2p * be1 + be2                                      # (TB, F)
    # Fold bias@W1x, ht@W1h and the ff1 bias into a single per-bt vector.
    cvec = (jnp.dot(bias, w1x_ref[...], preferred_element_type=f32)
            + jnp.dot(ht_t, w1h_ref[...], preferred_element_type=f32)
            + b1_ref[...])                                      # (TB, F)

    # ---- lane-tile per-bt vectors A times (0/1 tiling matmul; O(TB), MXU) ---
    tmat = tmat_ref[...]                                        # (F, A*F)
    gain_t = jnp.dot(gain, tmat, preferred_element_type=f32)    # (TB, A*F)
    cvec_t = jnp.dot(cvec, tmat, preferred_element_type=f32)    # (TB, A*F)

    # ---- per-action head: block-diagonal matmuls over packed lanes ----------
    x = gain_t * sae_t
    h1 = jnp.maximum(
        jnp.dot(x, w1bd_ref[...], preferred_element_type=f32) + cvec_t, 0.0)
    h2 = jnp.maximum(
        jnp.dot(h1, w2bd_ref[...], preferred_element_type=f32) + b2t_ref[...], 0.0)
    logits = (jnp.dot(h2, w3bd_ref[...], preferred_element_type=f32)
              + b3t_ref[...])                                   # (TB, A*NO)

    # ---- per-action (segmented) softmax over contiguous NO-lane segments ----
    m_segs = jnp.concatenate(
        [jnp.max(logits[:, a * NO:(a + 1) * NO], axis=-1, keepdims=True)
         for a in range(A)], axis=-1)                           # (TB, A)
    m_full = jnp.dot(m_segs, segb_ref[...], preferred_element_type=f32)
    e = jnp.exp(logits - m_full)                                # pad cols -> 0
    s_segs = jnp.concatenate(
        [jnp.sum(e[:, a * NO:(a + 1) * NO], axis=-1, keepdims=True)
         for a in range(A)], axis=-1)                           # (TB, A)
    r_segs = pl.reciprocal(s_segs)       # exact: rows sum to 1 at f32 precision
    r_full = jnp.dot(r_segs, segb_ref[...], preferred_element_type=f32)
    out_ref[...] = e * r_full


# ----------------------------------------------------------------------------
# Wrapper
# ----------------------------------------------------------------------------
def decision_maker_c51_lstm(state_action_emb, goal, ht, params, *,
                            action_size, feature_size, n_atoms, tile_bt=512):
    f32 = jnp.float32
    B, T = state_action_emb.shape[:2]
    A, F = action_size, feature_size
    L = goal.shape[-1]
    BT = B * T
    # Pad atoms to a 64-lane half-vreg only (NOT 128: would double the output
    # bytes on bandwidth-poor v5e).  A*NO is the packed lane-dense output width.
    NO = _round_up(n_atoms, 64)

    # ---- tile size over (B*T) rows ------------------------------------------
    TB = _round_up(min(tile_bt, BT), 8)
    BTp = _round_up(BT, TB)
    if BTp // TB == 1 and BT > 8:
        # Guarantee >= 2 grid steps so ("parallel",) can shard across the two
        # TensorCores on v7x (harmless extra ~0.35us step on v5e/v6e).
        TB = _round_up((BT + 1) // 2, 8)
        BTp = _round_up(BT, TB)

    sae2 = state_action_emb.reshape(BT, A * F).astype(f32)   # native packed layout
    goal2 = goal.reshape(BT, L).astype(f32)
    ht2 = ht.reshape(BT, F).astype(f32)
    if BTp != BT:
        pad = BTp - BT
        sae2 = jnp.pad(sae2, ((0, pad), (0, 0)))
        goal2 = jnp.pad(goal2, ((0, pad), (0, 0)))
        ht2 = jnp.pad(ht2, ((0, pad), (0, 0)))

    # ---- weight prep ---------------------------------------------------------
    # Fused FiLM projection, columns ordered [g1 | g2 | b1 | b2].
    wf = jnp.concatenate([params["wg1"], params["wg2"],
                          params["wb1"], params["wb2"]], axis=1)   # (L, 4F)
    bf = jnp.concatenate([params["bg1"], params["bg2"],
                          params["bb1"], params["bb2"]], axis=1)   # (1, 4F)

    # 0/1 lane-tiling matrix: A horizontal copies of I_F (28 KiB, resident).
    tmat = jnp.tile(jnp.eye(F, dtype=f32), (1, A))                 # (F, A*F)

    # Pad ff3 to NO output lanes; pad bias -1e30 -> softmax weight exactly 0.
    w3p = jnp.pad(params["w3"], ((0, 0), (0, NO - n_atoms)))
    if NO != n_atoms:
        b3p = jnp.concatenate(
            [params["b3"], jnp.full((1, NO - n_atoms), -1e30, f32)], axis=1)
    else:
        b3p = params["b3"]

    # Block-diagonal head weights (A copies on the diagonal), built once.
    w1bd = jnp.kron(jnp.eye(A, dtype=f32), params["w1x"])          # (A*F, A*F)
    w2bd = jnp.kron(jnp.eye(A, dtype=f32), params["w2"])           # (A*F, A*H)
    w3bd = jnp.kron(jnp.eye(A, dtype=f32), w3p)                    # (A*H, A*NO)
    b2t = jnp.tile(params["b2"], (1, A))                           # (1, A*H)
    b3t = jnp.tile(b3p, (1, A))                                    # (1, A*NO)

    # 0/1 per-action segment lane-broadcast matrix (A, A*NO).
    segb = (jnp.arange(A * NO)[None, :] // NO
            == jnp.arange(A)[:, None]).astype(f32)

    weights = [wf, bf, params["w1h"], params["w1x"], params["b1"],
               tmat, w1bd, w2bd, b2t, w3bd, b3t, segb]

    row_spec = lambda d: pl.BlockSpec((TB, d), lambda i: (i, 0))
    # Constant index_map => each weight block is DMA'd once.  Total resident
    # weight footprint is < 1 MiB, so default double-buffering is negligible.
    full_spec = lambda w: pl.BlockSpec(w.shape, lambda i: (0,) * w.ndim)

    out = pl.pallas_call(
        _decision_kernel,
        out_shape=jax.ShapeDtypeStruct((BTp, A * NO), f32),
        grid_spec=pltpu.PrefetchScalarGridSpec(
            num_scalar_prefetch=0,
            grid=(BTp // TB,),
            in_specs=[row_spec(A * F), row_spec(L), row_spec(F)]
                     + [full_spec(w) for w in weights],
            out_specs=pl.BlockSpec((TB, A * NO), lambda i: (i, 0)),
        ),
        compiler_params=pltpu.CompilerParams(
            dimension_semantics=("parallel",)),
    )(sae2, goal2, ht2, *weights)

    return out[:BT].reshape(B, T, A, NO)[..., :n_atoms]


# ----------------------------------------------------------------------------
# Deterministic parameter init (PyTorch Linear-style uniform(-1/sqrt(fan_in))).
# Weights are stored transposed: (in_features, out_features).
# ----------------------------------------------------------------------------
def init_params(key, feature_size, lang_feature_size, n_atoms):
    F, L = feature_size, lang_feature_size
    H = F // 2

    def linear(key, fan_in, fan_out):
        kw, kb = jax.random.split(key)
        lim = 1.0 / jnp.sqrt(jnp.float32(fan_in))
        w = jax.random.uniform(kw, (fan_in, fan_out), jnp.float32, -lim, lim)
        b = jax.random.uniform(kb, (1, fan_out), jnp.float32, -lim, lim)
        return w, b

    keys = jax.random.split(key, 7)
    wg1, bg1 = linear(keys[0], L, F)          # film1 gamma
    wb1, bb1 = linear(keys[1], L, F)          # film1 beta
    wg2, bg2 = linear(keys[2], L, F)          # film2 gamma
    wb2, bb2 = linear(keys[3], L, F)          # film2 beta
    w1, b1 = linear(keys[4], 2 * F, F)        # ff1 (input = concat([ht, x]))
    w2, b2 = linear(keys[5], F, H)            # ff2
    w3, b3 = linear(keys[6], H, n_atoms)      # ff3
    return dict(
        wg1=wg1, bg1=bg1, wb1=wb1, bb1=bb1,
        wg2=wg2, bg2=bg2, wb2=wb2, bb2=bb2,
        w1h=w1[:F], w1x=w1[F:], b1=b1,
        w2=w2, b2=b2,
        w3=w3, b3=b3,
    )
    # TODO(synk): norm1/norm2/norm3 and relu3 from __init__ are unused in the
    # reference forward pass, so they are intentionally not instantiated.


# ----------------------------------------------------------------------------
# Pure-JAX reference mirroring the original (unfused) PyTorch forward.
# ----------------------------------------------------------------------------
def reference(state_action_emb, goal, ht, params, *,
              action_size, feature_size, n_atoms):
    B, T = state_action_emb.shape[:2]
    A, F = action_size, feature_size
    sae = state_action_emb.reshape(B, T, A, F)
    goal_e = jnp.broadcast_to(goal[:, :, None, :], (B, T, A, goal.shape[-1]))
    ht_e = jnp.broadcast_to(ht[:, :, None, :], (B, T, A, ht.shape[-1]))
    p = params
    g1 = goal_e @ p["wg1"] + p["bg1"]
    be1 = goal_e @ p["wb1"] + p["bb1"]
    x = g1 * sae + be1 + sae
    g2 = goal_e @ p["wg2"] + p["bg2"]
    be2 = goal_e @ p["wb2"] + p["bb2"]
    x = g2 * x + be2 + x
    h1 = jnp.maximum(ht_e @ p["w1h"] + x @ p["w1x"] + p["b1"], 0.0)
    h2 = jnp.maximum(h1 @ p["w2"] + p["b2"], 0.0)
    logits = h2 @ p["w3"] + p["b3"]
    return jax.nn.softmax(logits, axis=-1)


if __name__ == "__main__":
    feature_size = 32
    lang_feature_size = 32
    action_size = 7
    n_atoms = 51

    key = jax.random.PRNGKey(0)
    k_p, k_s, k_g, k_h = jax.random.split(key, 4)
    params = init_params(k_p, feature_size, lang_feature_size, n_atoms)

    run = functools.partial(decision_maker_c51_lstm,
                            action_size=action_size,
                            feature_size=feature_size,
                            n_atoms=n_atoms)
    ref_fn = functools.partial(reference,
                               action_size=action_size,
                               feature_size=feature_size,
                               n_atoms=n_atoms)

    # Loosened vs exact f32 only because the algebraic FiLM fusion changes the
    # rounding order; the softmax normalization itself is now exact.
    ATOL, RTOL = 1e-3, 1e-2

    # Case 1: B*T = 8 -> single grid step.
    B, T = 2, 4
    sae = jax.random.normal(k_s, (B, T, action_size * feature_size), jnp.float32)
    goal = jax.random.normal(k_g, (B, T, lang_feature_size), jnp.float32)
    ht = jax.random.normal(k_h, (B, T, feature_size), jnp.float32)

    out = run(sae, goal, ht, params)
    jax.block_until_ready(out)
    ref = ref_fn(sae, goal, ht, params)

    assert out.shape == (B, T, action_size, n_atoms), out.shape
    assert jnp.allclose(jnp.sum(out, axis=-1), 1.0, atol=1e-3)
    assert jnp.allclose(out, ref, atol=ATOL, rtol=RTOL)

    # Case 2: B*T = 15 -> forced 2-step grid (v7x megacore path) + row padding.
    B2, T2 = 3, 5
    k_s2, k_g2, k_h2 = jax.random.split(jax.random.PRNGKey(1), 3)
    sae_b = jax.random.normal(k_s2, (B2, T2, action_size * feature_size), jnp.float32)
    goal_b = jax.random.normal(k_g2, (B2, T2, lang_feature_size), jnp.float32)
    ht_b = jax.random.normal(k_h2, (B2, T2, feature_size), jnp.float32)

    out2 = run(sae_b, goal_b, ht_b, params)
    jax.block_until_ready(out2)
    ref2 = ref_fn(sae_b, goal_b, ht_b, params)

    assert out2.shape == (B2, T2, action_size, n_atoms), out2.shape
    assert jnp.allclose(jnp.sum(out2, axis=-1), 1.0, atol=1e-3)
    assert jnp.allclose(out2, ref2, atol=ATOL, rtol=RTOL)

    print("KERNEL_OK")
</pallas_src>

<mosaic_0001>
module attributes {stable_mosaic.version = 11 : i64} {
  func.func @_decision_kernel(%arg0: i32, %arg1: memref<8x224xf32, #tpu.memory_space<vmem>>, %arg2: memref<8x32xf32, #tpu.memory_space<vmem>>, %arg3: memref<8x32xf32, #tpu.memory_space<vmem>>, %arg4: memref<32x128xf32, #tpu.memory_space<vmem>>, %arg5: memref<1x128xf32, #tpu.memory_space<vmem>>, %arg6: memref<32x32xf32, #tpu.memory_space<vmem>>, %arg7: memref<32x32xf32, #tpu.memory_space<vmem>>, %arg8: memref<1x32xf32, #tpu.memory_space<vmem>>, %arg9: memref<32x224xf32, #tpu.memory_space<vmem>>, %arg10: memref<224x224xf32, #tpu.memory_space<vmem>>, %arg11: memref<224x112xf32, #tpu.memory_space<vmem>>, %arg12: memref<1x112xf32, #tpu.memory_space<vmem>>, %arg13: memref<112x448xf32, #tpu.memory_space<vmem>>, %arg14: memref<1x448xf32, #tpu.memory_space<vmem>>, %arg15: memref<7x448xf32, #tpu.memory_space<vmem>>, %arg16: memref<8x448xf32, #tpu.memory_space<vmem>>) attributes {dimension_semantics = [#tpu.dimension_semantics<parallel>], iteration_bounds = array<i64: 1>, scalar_prefetch = 0 : i64, scratch_operands = 0 : i64, tpu.core_type = #tpu.core_type<tc>, window_params = [{transform_indices = @transform_0, window_bounds = array<i64: 8, 224>}, {transform_indices = @transform_1, window_bounds = array<i64: 8, 32>}, {transform_indices = @transform_2, window_bounds = array<i64: 8, 32>}, {pipeline_mode = #tpu.pipeline_mode<synchronous>, transform_indices = @transform_3, window_bounds = array<i64: 32, 128>}, {pipeline_mode = #tpu.pipeline_mode<synchronous>, transform_indices = @transform_4, window_bounds = array<i64: 1, 128>}, {pipeline_mode = #tpu.pipeline_mode<synchronous>, transform_indices = @transform_5, window_bounds = array<i64: 32, 32>}, {pipeline_mode = #tpu.pipeline_mode<synchronous>, transform_indices = @transform_6, window_bounds = array<i64: 32, 32>}, {pipeline_mode = #tpu.pipeline_mode<synchronous>, transform_indices = @transform_7, window_bounds = array<i64: 1, 32>}, {pipeline_mode = #tpu.pipeline_mode<synchronous>, transform_indices = @transform_8, window_bounds = array<i64: 32, 224>}, {pipeline_mode = #tpu.pipeline_mode<synchronous>, transform_indices = @transform_9, window_bounds = array<i64: 224, 224>}, {pipeline_mode = #tpu.pipeline_mode<synchronous>, transform_indices = @transform_10, window_bounds = array<i64: 224, 112>}, {pipeline_mode = #tpu.pipeline_mode<synchronous>, transform_indices = @transform_11, window_bounds = array<i64: 1, 112>}, {pipeline_mode = #tpu.pipeline_mode<synchronous>, transform_indices = @transform_12, window_bounds = array<i64: 112, 448>}, {pipeline_mode = #tpu.pipeline_mode<synchronous>, transform_indices = @transform_13, window_bounds = array<i64: 1, 448>}, {pipeline_mode = #tpu.pipeline_mode<synchronous>, transform_indices = @transform_14, window_bounds = array<i64: 7, 448>}, {transform_indices = @transform_15, window_bounds = array<i64: 8, 448>}]} {
    %c0 = arith.constant 0 : index
    %c0_0 = arith.constant 0 : index
    %0 = vector.load %arg2[%c0, %c0_0] : memref<8x32xf32, #tpu.memory_space<vmem>>, vector<8x32xf32>
    %c0_1 = arith.constant 0 : index
    %c0_2 = arith.constant 0 : index
    %1 = vector.load %arg3[%c0_1, %c0_2] : memref<8x32xf32, #tpu.memory_space<vmem>>, vector<8x32xf32>
    %c0_3 = arith.constant 0 : index
    %c0_4 = arith.constant 0 : index
    %2 = vector.load %arg1[%c0_3, %c0_4] : memref<8x224xf32, #tpu.memory_space<vmem>>, vector<8x224xf32>
    %c0_5 = arith.constant 0 : index
    %c0_6 = arith.constant 0 : index
    %3 = vector.load %arg4[%c0_5, %c0_6] : memref<32x128xf32, #tpu.memory_space<vmem>>, vector<32x128xf32>
    %cst = arith.constant dense<0.000000e+00> : vector<8x128xf32>
    %4 = tpu.matmul %0, %3, %cst {dimension_numbers = #tpu.dot_dimension_numbers<[1], [0], [0], [1], [0, 0, 1, 1], [], []>} : vector<8x32xf32>, vector<32x128xf32>, vector<8x128xf32> -> vector<8x128xf32>
    %c0_7 = arith.constant 0 : index
    %c0_8 = arith.constant 0 : index
    %5 = vector.load %arg5[%c0_7, %c0_8] : memref<1x128xf32, #tpu.memory_space<vmem>>, vector<1x128xf32>
    %6 = vector.broadcast %5 : vector<1x128xf32> to vector<8x128xf32>
    %7 = arith.addf %4, %6 : vector<8x128xf32>
    %8 = vector.extract_strided_slice %7 {offsets = [0, 0], sizes = [8, 32], strides = [1, 1]} : vector<8x128xf32> to vector<8x32xf32>
    %cst_9 = arith.constant 1.000000e+00 : f32
    %9 = vector.broadcast %cst_9 : f32 to vector<8x32xf32>
    %10 = arith.addf %8, %9 : vector<8x32xf32>
    %11 = vector.extract_strided_slice %7 {offsets = [0, 32], sizes = [8, 32], strides = [1, 1]} : vector<8x128xf32> to vector<8x32xf32>
    %cst_10 = arith.constant 1.000000e+00 : f32
    %12 = vector.broadcast %cst_10 : f32 to vector<8x32xf32>
    %13 = arith.addf %11, %12 : vector<8x32xf32>
    %14 = vector.extract_strided_slice %7 {offsets = [0, 64], sizes = [8, 32], strides = [1, 1]} : vector<8x128xf32> to vector<8x32xf32>
    %15 = vector.extract_strided_slice %7 {offsets = [0, 96], sizes = [8, 32], strides = [1, 1]} : vector<8x128xf32> to vector<8x32xf32>
    %16 = arith.mulf %10, %13 : vector<8x32xf32>
    %17 = arith.mulf %13, %14 : vector<8x32xf32>
    %18 = arith.addf %17, %15 : vector<8x32xf32>
    %c0_11 = arith.constant 0 : index
    %c0_12 = arith.constant 0 : index
    %19 = vector.load %arg7[%c0_11, %c0_12] : memref<32x32xf32, #tpu.memory_space<vmem>>, vector<32x32xf32>
    %cst_13 = arith.constant dense<0.000000e+00> : vector<8x32xf32>
    %20 = tpu.matmul %18, %19, %cst_13 {dimension_numbers = #tpu.dot_dimension_numbers<[1], [0], [0], [1], [0, 0, 1, 1], [], []>} : vector<8x32xf32>, vector<32x32xf32>, vector<8x32xf32> -> vector<8x32xf32>
    %c0_14 = arith.constant 0 : index
    %c0_15 = arith.constant 0 : index
    %21 = vector.load %arg6[%c0_14, %c0_15] : memref<32x32xf32, #tpu.memory_space<vmem>>, vector<32x32xf32>
    %cst_16 = arith.constant dense<0.000000e+00> : vector<8x32xf32>
    %22 = tpu.matmul %1, %21, %cst_16 {dimension_numbers = #tpu.dot_dimension_numbers<[1], [0], [0], [1], [0, 0, 1, 1], [], []>} : vector<8x32xf32>, vector<32x32xf32>, vector<8x32xf32> -> vector<8x32xf32>
    %23 = arith.addf %20, %22 : vector<8x32xf32>
    %c0_17 = arith.constant 0 : index
    %c0_18 = arith.constant 0 : index
    %24 = vector.load %arg8[%c0_17, %c0_18] : memref<1x32xf32, #tpu.memory_space<vmem>>, vector<1x32xf32>
    %25 = vector.broadcast %24 : vector<1x32xf32> to vector<8x32xf32>
    %26 = arith.addf %23, %25 : vector<8x32xf32>
    %c0_19 = arith.constant 0 : index
    %c0_20 = arith.constant 0 : index
    %27 = vector.load %arg9[%c0_19, %c0_20] : memref<32x224xf32, #tpu.memory_space<vmem>>, vector<32x224xf32>
    %cst_21 = arith.constant dense<0.000000e+00> : vector<8x224xf32>
    %28 = tpu.matmul %16, %27, %cst_21 {dimension_numbers = #tpu.dot_dimension_numbers<[1], [0], [0], [1], [0, 0, 1, 1], [], []>} : vector<8x32xf32>, vector<32x224xf32>, vector<8x224xf32> -> vector<8x224xf32>
    %cst_22 = arith.constant dense<0.000000e+00> : vector<8x224xf32>
    %29 = tpu.matmul %26, %27, %cst_22 {dimension_numbers = #tpu.dot_dimension_numbers<[1], [0], [0], [1], [0, 0, 1, 1], [], []>} : vector<8x32xf32>, vector<32x224xf32>, vector<8x224xf32> -> vector<8x224xf32>
    %30 = arith.mulf %28, %2 : vector<8x224xf32>
    %c0_23 = arith.constant 0 : index
    %c0_24 = arith.constant 0 : index
    %31 = vector.load %arg10[%c0_23, %c0_24] : memref<224x224xf32, #tpu.memory_space<vmem>>, vector<224x224xf32>
    %cst_25 = arith.constant dense<0.000000e+00> : vector<8x224xf32>
    %32 = tpu.matmul %30, %31, %cst_25 {dimension_numbers = #tpu.dot_dimension_numbers<[1], [0], [0], [1], [0, 0, 1, 1], [], []>} : vector<8x224xf32>, vector<224x224xf32>, vector<8x224xf32> -> vector<8x224xf32>
    %33 = arith.addf %32, %29 : vector<8x224xf32>
    %cst_26 = arith.constant 0.000000e+00 : f32
    %34 = vector.broadcast %cst_26 : f32 to vector<8x224xf32>
    %35 = arith.maximumf %33, %34 : vector<8x224xf32>
    %c0_27 = arith.constant 0 : index
    %c0_28 = arith.constant 0 : index
    %36 = vector.load %arg11[%c0_27, %c0_28] : memref<224x112xf32, #tpu.memory_space<vmem>>, vector<224x112xf32>
    %cst_29 = arith.constant dense<0.000000e+00> : vector<8x112xf32>
    %37 = tpu.matmul %35, %36, %cst_29 {dimension_numbers = #tpu.dot_dimension_numbers<[1], [0], [0], [1], [0, 0, 1, 1], [], []>} : vector<8x224xf32>, vector<224x112xf32>, vector<8x112xf32> -> vector<8x112xf32>
    %c0_30 = arith.constant 0 : index
    %c0_31 = arith.constant 0 : index
    %38 = vector.load %arg12[%c0_30, %c0_31] : memref<1x112xf32, #tpu.memory_space<vmem>>, vector<1x112xf32>
    %39 = vector.broadcast %38 : vector<1x112xf32> to vector<8x112xf32>
    %40 = arith.addf %37, %39 : vector<8x112xf32>
    %cst_32 = arith.constant 0.000000e+00 : f32
    %41 = vector.broadcast %cst_32 : f32 to vector<8x112xf32>
    %42 = arith.maximumf %40, %41 : vector<8x112xf32>
    %c0_33 = arith.constant 0 : index
    %c0_34 = arith.constant 0 : index
    %43 = vector.load %arg13[%c0_33, %c0_34] : memref<112x448xf32, #tpu.memory_space<vmem>>, vector<112x448xf32>
    %cst_35 = arith.constant dense<0.000000e+00> : vector<8x448xf32>
    %44 = tpu.matmul %42, %43, %cst_35 {dimension_numbers = #tpu.dot_dimension_numbers<[1], [0], [0], [1], [0, 0, 1, 1], [], []>} : vector<8x112xf32>, vector<112x448xf32>, vector<8x448xf32> -> vector<8x448xf32>
    %c0_36 = arith.constant 0 : index
    %c0_37 = arith.constant 0 : index
    %45 = vector.load %arg14[%c0_36, %c0_37] : memref<1x448xf32, #tpu.memory_space<vmem>>, vector<1x448xf32>
    %46 = vector.broadcast %45 : vector<1x448xf32> to vector<8x448xf32>
    %47 = arith.addf %44, %46 : vector<8x448xf32>
    %48 = vector.extract_strided_slice %47 {offsets = [0, 0], sizes = [8, 64], strides = [1, 1]} : vector<8x448xf32> to vector<8x64xf32>
    %cst_38 = arith.constant dense<0xFF800000> : vector<8xf32>
    %49 = vector.multi_reduction <maximumf>, %48, %cst_38 [1] : vector<8x64xf32> to vector<8xf32>
    %50 = vector.shape_cast %49 : vector<8xf32> to vector<8x1xf32>
    %51 = vector.extract_strided_slice %47 {offsets = [0, 64], sizes = [8, 64], strides = [1, 1]} : vector<8x448xf32> to vector<8x64xf32>
    %cst_39 = arith.constant dense<0xFF800000> : vector<8xf32>
    %52 = vector.multi_reduction <maximumf>, %51, %cst_39 [1] : vector<8x64xf32> to vector<8xf32>
    %53 = vector.shape_cast %52 : vector<8xf32> to vector<8x1xf32>
    %54 = vector.extract_strided_slice %47 {offsets = [0, 128], sizes = [8, 64], strides = [1, 1]} : vector<8x448xf32> to vector<8x64xf32>
    %cst_40 = arith.constant dense<0xFF800000> : vector<8xf32>
    %55 = vector.multi_reduction <maximumf>, %54, %cst_40 [1] : vector<8x64xf32> to vector<8xf32>
    %56 = vector.shape_cast %55 : vector<8xf32> to vector<8x1xf32>
    %57 = vector.extract_strided_slice %47 {offsets = [0, 192], sizes = [8, 64], strides = [1, 1]} : vector<8x448xf32> to vector<8x64xf32>
    %cst_41 = arith.constant dense<0xFF800000> : vector<8xf32>
    %58 = vector.multi_reduction <maximumf>, %57, %cst_41 [1] : vector<8x64xf32> to vector<8xf32>
    %59 = vector.shape_cast %58 : vector<8xf32> to vector<8x1xf32>
    %60 = vector.extract_strided_slice %47 {offsets = [0, 256], sizes = [8, 64], strides = [1, 1]} : vector<8x448xf32> to vector<8x64xf32>
    %cst_42 = arith.constant dense<0xFF800000> : vector<8xf32>
    %61 = vector.multi_reduction <maximumf>, %60, %cst_42 [1] : vector<8x64xf32> to vector<8xf32>
    %62 = vector.shape_cast %61 : vector<8xf32> to vector<8x1xf32>
    %63 = vector.extract_strided_slice %47 {offsets = [0, 320], sizes = [8, 64], strides = [1, 1]} : vector<8x448xf32> to vector<8x64xf32>
    %cst_43 = arith.constant dense<0xFF800000> : vector<8xf32>
    %64 = vector.multi_reduction <maximumf>, %63, %cst_43 [1] : vector<8x64xf32> to vector<8xf32>
    %65 = vector.shape_cast %64 : vector<8xf32> to vector<8x1xf32>
    %66 = vector.extract_strided_slice %47 {offsets = [0, 384], sizes = [8, 64], strides = [1, 1]} : vector<8x448xf32> to vector<8x64xf32>
    %cst_44 = arith.constant dense<0xFF800000> : vector<8xf32>
    %67 = vector.multi_reduction <maximumf>, %66, %cst_44 [1] : vector<8x64xf32> to vector<8xf32>
    %68 = vector.shape_cast %67 : vector<8xf32> to vector<8x1xf32>
    %69 = tpu.concatenate %50, %53, %56, %59, %62, %65, %68 in 1 : vector<8x1xf32>, vector<8x1xf32>, vector<8x1xf32>, vector<8x1xf32>, vector<8x1xf32>, vector<8x1xf32>, vector<8x1xf32> -> vector<8x7xf32>
    %c0_45 = arith.constant 0 : index
    %c0_46 = arith.constant 0 : index
    %70 = vector.load %arg15[%c0_45, %c0_46] : memref<7x448xf32, #tpu.memory_space<vmem>>, vector<7x448xf32>
    %cst_47 = arith.constant dense<0.000000e+00> : vector<8x448xf32>
    %71 = tpu.matmul %69, %70, %cst_47 {dimension_numbers = #tpu.dot_dimension_numbers<[1], [0], [0], [1], [0, 0, 1, 1], [], []>} : vector<8x7xf32>, vector<7x448xf32>, vector<8x448xf32> -> vector<8x448xf32>
    %72 = arith.subf %47, %71 : vector<8x448xf32>
    %73 = math.exp %72 : vector<8x448xf32>
    %74 = vector.extract_strided_slice %73 {offsets = [0, 0], sizes = [8, 64], strides = [1, 1]} : vector<8x448xf32> to vector<8x64xf32>
    %cst_48 = arith.constant dense<0.000000e+00> : vector<8xf32>
    %75 = vector.multi_reduction <add>, %74, %cst_48 [1] : vector<8x64xf32> to vector<8xf32>
    %76 = vector.shape_cast %75 : vector<8xf32> to vector<8x1xf32>
    %77 = vector.extract_strided_slice %73 {offsets = [0, 64], sizes = [8, 64], strides = [1, 1]} : vector<8x448xf32> to vector<8x64xf32>
    %cst_49 = arith.constant dense<0.000000e+00> : vector<8xf32>
    %78 = vector.multi_reduction <add>, %77, %cst_49 [1] : vector<8x64xf32> to vector<8xf32>
    %79 = vector.shape_cast %78 : vector<8xf32> to vector<8x1xf32>
    %80 = vector.extract_strided_slice %73 {offsets = [0, 128], sizes = [8, 64], strides = [1, 1]} : vector<8x448xf32> to vector<8x64xf32>
    %cst_50 = arith.constant dense<0.000000e+00> : vector<8xf32>
    %81 = vector.multi_reduction <add>, %80, %cst_50 [1] : vector<8x64xf32> to vector<8xf32>
    %82 = vector.shape_cast %81 : vector<8xf32> to vector<8x1xf32>
    %83 = vector.extract_strided_slice %73 {offsets = [0, 192], sizes = [8, 64], strides = [1, 1]} : vector<8x448xf32> to vector<8x64xf32>
    %cst_51 = arith.constant dense<0.000000e+00> : vector<8xf32>
    %84 = vector.multi_reduction <add>, %83, %cst_51 [1] : vector<8x64xf32> to vector<8xf32>
    %85 = vector.shape_cast %84 : vector<8xf32> to vector<8x1xf32>
    %86 = vector.extract_strided_slice %73 {offsets = [0, 256], sizes = [8, 64], strides = [1, 1]} : vector<8x448xf32> to vector<8x64xf32>
    %cst_52 = arith.constant dense<0.000000e+00> : vector<8xf32>
    %87 = vector.multi_reduction <add>, %86, %cst_52 [1] : vector<8x64xf32> to vector<8xf32>
    %88 = vector.shape_cast %87 : vector<8xf32> to vector<8x1xf32>
    %89 = vector.extract_strided_slice %73 {offsets = [0, 320], sizes = [8, 64], strides = [1, 1]} : vector<8x448xf32> to vector<8x64xf32>
    %cst_53 = arith.constant dense<0.000000e+00> : vector<8xf32>
    %90 = vector.multi_reduction <add>, %89, %cst_53 [1] : vector<8x64xf32> to vector<8xf32>
    %91 = vector.shape_cast %90 : vector<8xf32> to vector<8x1xf32>
    %92 = vector.extract_strided_slice %73 {offsets = [0, 384], sizes = [8, 64], strides = [1, 1]} : vector<8x448xf32> to vector<8x64xf32>
    %cst_54 = arith.constant dense<0.000000e+00> : vector<8xf32>
    %93 = vector.multi_reduction <add>, %92, %cst_54 [1] : vector<8x64xf32> to vector<8xf32>
    %94 = vector.shape_cast %93 : vector<8xf32> to vector<8x1xf32>
    %95 = tpu.concatenate %76, %79, %82, %85, %88, %91, %94 in 1 : vector<8x1xf32>, vector<8x1xf32>, vector<8x1xf32>, vector<8x1xf32>, vector<8x1xf32>, vector<8x1xf32>, vector<8x1xf32> -> vector<8x7xf32>
    %96 = tpu.reciprocal %95 : vector<8x7xf32> -> vector<8x7xf32>
    %c0_55 = arith.constant 0 : index
    %c0_56 = arith.constant 0 : index
    %97 = vector.load %arg15[%c0_55, %c0_56] : memref<7x448xf32, #tpu.memory_space<vmem>>, vector<7x448xf32>
    %cst_57 = arith.constant dense<0.000000e+00> : vector<8x448xf32>
    %98 = tpu.matmul %96, %97, %cst_57 {dimension_numbers = #tpu.dot_dimension_numbers<[1], [0], [0], [1], [0, 0, 1, 1], [], []>} : vector<8x7xf32>, vector<7x448xf32>, vector<8x448xf32> -> vector<8x448xf32>
    %99 = arith.mulf %73, %98 : vector<8x448xf32>
    %c0_58 = arith.constant 0 : index
    %c0_59 = arith.constant 0 : index
    %100 = vector.load %arg16[%c0_58, %c0_59] : memref<8x448xf32, #tpu.memory_space<vmem>>, vector<8x448xf32>
    tpu.vector_store %arg16[%c0_58, %c0_59], %99 {strides = array<i32>} : memref<8x448xf32, #tpu.memory_space<vmem>>, vector<8x448xf32>,
    return
  }
  func.func @transform_0(%arg0: i32) -> (i32, i32) {
    %c0_i32 = arith.constant 0 : i32
    %c0_i32_0 = arith.constant 0 : i32
    return %arg0, %c0_i32 : i32, i32
  }
  func.func @transform_1(%arg0: i32) -> (i32, i32) {
    %c0_i32 = arith.constant 0 : i32
    %c0_i32_0 = arith.constant 0 : i32
    return %arg0, %c0_i32 : i32, i32
  }
  func.func @transform_2(%arg0: i32) -> (i32, i32) {
    %c0_i32 = arith.constant 0 : i32
    %c0_i32_0 = arith.constant 0 : i32
    return %arg0, %c0_i32 : i32, i32
  }
  func.func @transform_3(%arg0: i32) -> (i32, i32) {
    %c0_i32 = arith.constant 0 : i32
    %c0_i32_0 = arith.constant 0 : i32
    %c0_i32_1 = arith.constant 0 : i32
    return %c0_i32, %c0_i32_0 : i32, i32
  }
  func.func @transform_4(%arg0: i32) -> (i32, i32) {
    %c0_i32 = arith.constant 0 : i32
    %c0_i32_0 = arith.constant 0 : i32
    %c0_i32_1 = arith.constant 0 : i32
    return %c0_i32, %c0_i32_0 : i32, i32
  }
  func.func @transform_5(%arg0: i32) -> (i32, i32) {
    %c0_i32 = arith.constant 0 : i32
    %c0_i32_0 = arith.constant 0 : i32
    %c0_i32_1 = arith.constant 0 : i32
    return %c0_i32, %c0_i32_0 : i32, i32
  }
  func.func @transform_6(%arg0: i32) -> (i32, i32) {
    %c0_i32 = arith.constant 0 : i32
    %c0_i32_0 = arith.constant 0 : i32
    %c0_i32_1 = arith.constant 0 : i32
    return %c0_i32, %c0_i32_0 : i32, i32
  }
  func.func @transform_7(%arg0: i32) -> (i32, i32) {
    %c0_i32 = arith.constant 0 : i32
    %c0_i32_0 = arith.constant 0 : i32
    %c0_i32_1 = arith.constant 0 : i32
    return %c0_i32, %c0_i32_0 : i32, i32
  }
  func.func @transform_8(%arg0: i32) -> (i32, i32) {
    %c0_i32 = arith.constant 0 : i32
    %c0_i32_0 = arith.constant 0 : i32
    %c0_i32_1 = arith.constant 0 : i32
    return %c0_i32, %c0_i32_0 : i32, i32
  }
  func.func @transform_9(%arg0: i32) -> (i32, i32) {
    %c0_i32 = arith.constant 0 : i32
    %c0_i32_0 = arith.constant 0 : i32
    %c0_i32_1 = arith.constant 0 : i32
    return %c0_i32, %c0_i32_0 : i32, i32
  }
  func.func @transform_10(%arg0: i32) -> (i32, i32) {
    %c0_i32 = arith.constant 0 : i32
    %c0_i32_0 = arith.constant 0 : i32
    %c0_i32_1 = arith.constant 0 : i32
    return %c0_i32, %c0_i32_0 : i32, i32
  }
  func.func @transform_11(%arg0: i32) -> (i32, i32) {
    %c0_i32 = arith.constant 0 : i32
    %c0_i32_0 = arith.constant 0 : i32
    %c0_i32_1 = arith.constant 0 : i32
    return %c0_i32, %c0_i32_0 : i32, i32
  }
  func.func @transform_12(%arg0: i32) -> (i32, i32) {
    %c0_i32 = arith.constant 0 : i32
    %c0_i32_0 = arith.constant 0 : i32
    %c0_i32_1 = arith.constant 0 : i32
    return %c0_i32, %c0_i32_0 : i32, i32
  }
  func.func @transform_13(%arg0: i32) -> (i32, i32) {
    %c0_i32 = arith.constant 0 : i32
    %c0_i32_0 = arith.constant 0 : i32
    %c0_i32_1 = arith.constant 0 : i32
    return %c0_i32, %c0_i32_0 : i32, i32
  }
  func.func @transform_14(%arg0: i32) -> (i32, i32) {
    %c0_i32 = arith.constant 0 : i32
    %c0_i32_0 = arith.constant 0 : i32
    %c0_i32_1 = arith.constant 0 : i32
    return %c0_i32, %c0_i32_0 : i32, i32
  }
  func.func @transform_15(%arg0: i32) -> (i32, i32) {
    %c0_i32 = arith.constant 0 : i32
    %c0_i32_0 = arith.constant 0 : i32
    return %arg0, %c0_i32 : i32, i32
  }
}

</mosaic_0001>

<llo_original>
// kernel: tpu_custom_call.1
$region0: #{tpu_custom_call.1}
  #allocation0 [shape = 'u32[]', space=smem, size = 0x4, offset = 0x4, fixed_abs, tag = 'smem constant byte address 0x4 - core index']
  #allocation1 [shape = 'u32[72,128]{1,0:T(1,128)}', space=vmem, size = 0x9000, scoped, tag = 'internal scratch']
  %s0 = inlined_call_operand.hbm [shape: f32[8,224], index: 0, kind: input, shape index: {}]
  %s1 = inlined_call_operand.hbm [shape: f32[8,32], index: 1, kind: input, shape index: {}]
  %s2 = inlined_call_operand.hbm [shape: f32[8,32], index: 2, kind: input, shape index: {}]
  %s3 = inlined_call_operand.hbm [shape: f32[32,128], index: 3, kind: input, shape index: {}]
  %s4 = inlined_call_operand.vmem [shape: f32[1,128], index: 4, kind: input, shape index: {}]
  %s5 = inlined_call_operand.hbm [shape: f32[32,32], index: 5, kind: input, shape index: {}]
  %s6 = inlined_call_operand.hbm [shape: f32[32,32], index: 6, kind: input, shape index: {}]
  %s7 = inlined_call_operand.vmem [shape: f32[1,32], index: 7, kind: input, shape index: {}]
  %s8 = inlined_call_operand.hbm [shape: f32[32,224], index: 8, kind: input, shape index: {}]
  %s9 = inlined_call_operand.hbm [shape: f32[224,224], index: 9, kind: input, shape index: {}]
  %s10 = inlined_call_operand.hbm [shape: f32[224,112], index: 10, kind: input, shape index: {}]
  %s11 = inlined_call_operand.vmem [shape: f32[1,112], index: 11, kind: input, shape index: {}]
  %s12 = inlined_call_operand.hbm [shape: f32[112,448], index: 12, kind: input, shape index: {}]
  %s13 = inlined_call_operand.vmem [shape: f32[1,448], index: 13, kind: input, shape index: {}]
  %s14 = inlined_call_operand.hbm [shape: f32[7,448], index: 14, kind: input, shape index: {}]
  %s15 = inlined_call_operand.hbm [shape: f32[8,448], index: 15, kind: output, shape index: {}]
  %s16 = sld [smem:[#allocation0]]
  $region114: #{tpu_custom_call.1} parent=0
    _
  %s18 = ssub.s32 1, %s16
  %s19 = scalar_select 0, %s18, %s16
  $region1: #{tpu_custom_call.1} parent=0
    #allocation2 [shape = 'u8[8192]{0}', space=vmem, size = 0x2000, scoped, tag = 'input window, operand 0, single buffered']
    #allocation3 [shape = 's32[1]{0}', space=sflag, size = 0x4, scoped, tag = 'scoped memory for tpu_custom_call.1']
    #allocation4 [shape = 's32[1]{0}', space=sflag, size = 0x4, scoped, tag = 'scoped memory for tpu_custom_call.1']
    #allocation5 [shape = 'u8[4096]{0}', space=vmem, size = 0x1000, scoped, tag = 'input window, operand 1, single buffered']
    #allocation6 [shape = 's32[1]{0}', space=sflag, size = 0x4, scoped, tag = 'scoped memory for tpu_custom_call.1']
    #allocation7 [shape = 'u8[4096]{0}', space=vmem, size = 0x1000, scoped, tag = 'input window, operand 2, single buffered']
    #allocation8 [shape = 'u8[16384]{0}', space=vmem, size = 0x4000, scoped, tag = 'input window, operand 3, single buffered']
    #allocation9 [shape = 's32[1]{0}', space=sflag, size = 0x4, scoped, tag = 'scoped memory for tpu_custom_call.1']
    #allocation10 [shape = 'u8[16384]{0}', space=vmem, size = 0x4000, scoped, tag = 'input window, operand 5, single buffered']
    #allocation11 [shape = 'u8[16384]{0}', space=vmem, size = 0x4000, scoped, tag = 'input window, operand 6, single buffered']
    #allocation12 [shape = 's32[1]{0}', space=sflag, size = 0x4, scoped, tag = 'scoped memory for tpu_custom_call.1']
    #allocation13 [shape = 'u8[32768]{0}', space=vmem, size = 0x8000, scoped, tag = 'input window, operand 8, single buffered']
    #allocation14 [shape = 'u8[229376]{0}', space=vmem, size = 0x38000, scoped, tag = 'input window, operand 9, single buffered']
    #allocation15 [shape = 's32[1]{0}', space=sflag, size = 0x4, scoped, tag = 'scoped memory for tpu_custom_call.1']
    #allocation16 [shape = 'u8[114688]{0}', space=vmem, size = 0x1c000, scoped, tag = 'input window, operand 10, single buffered']
    #allocation17 [shape = 'u8[229376]{0}', space=vmem, size = 0x38000, scoped, tag = 'input window, operand 12, single buffered']
    #allocation18 [shape = 's32[1]{0}', space=sflag, size = 0x4, scoped, tag = 'scoped memory for tpu_custom_call.1']
    #allocation19 [shape = 'u8[16384]{0}', space=vmem, size = 0x4000, scoped, tag = 'input window, operand 14, single buffered']
    #allocation20 [shape = 'u8[16384]{0}', space=vmem, size = 0x4000, scoped, tag = 'output window, operand 0, single buffered']
    %20 = vsyncpa [#allocation3], 0
    %21 = vsyncpa [#allocation6], 0
    %22 = vsyncpa [#allocation9], 0
    %23 = vsyncpa [#allocation12], 0
    %24 = vsyncpa [#allocation15], 0
    %25 = vsyncpa [#allocation18], 0
    %26 = vsyncpa [#allocation4], 0
    // Predicated region
    $region2: #{tpu_custom_call.1} parent=1 // pred_check
      _
    $region3: #{tpu_custom_call.1} parent=1 // pred_check_branch
      %28 = sbr.rel (0) target = $region5
    $region4: #{tpu_custom_call.1} parent=1 // pred_region
      %30 = vsyncadd [#allocation3], 0
      %s32 = sshll.u32 %s0, 4
      %s33 = int_to_ptr.hbm [resolvable:$true] %s32
      %s34 = sshll.u32 [#allocation2], 4
      %s35 = int_to_ptr.vmem [resolvable:$true] %s34
      %37 = dma.hbm_to_vmem [thread:$0]  %s33, 256, %s35, [#allocation3]
    $region5: #{tpu_custom_call.1} parent=1 // pred_fallthru
      _
    // Predicated region
    $region6: #{tpu_custom_call.1} parent=1 // pred_check
      _
    $region7: #{tpu_custom_call.1} parent=1 // pred_check_branch
      %39 = sbr.rel (0) target = $region9
    $region8: #{tpu_custom_call.1} parent=1 // pred_region
      %41 = vsyncadd [#allocation6], 0
      %s43 = sshll.u32 %s1, 4
      %s44 = int_to_ptr.hbm [resolvable:$true] %s43
      %s45 = sshll.u32 [#allocation5], 4
      %s46 = int_to_ptr.vmem [resolvable:$true] %s45
      %48 = dma.hbm_to_vmem [thread:$0]  %s44, 128, %s46, [#allocation6]
    $region9: #{tpu_custom_call.1} parent=1 // pred_fallthru
      _
    // Predicated region
    $region10: #{tpu_custom_call.1} parent=1 // pred_check
      _
    $region11: #{tpu_custom_call.1} parent=1 // pred_check_branch
      %50 = sbr.rel (0) target = $region13
    $region12: #{tpu_custom_call.1} parent=1 // pred_region
      %52 = vsyncadd [#allocation6], 0
      %s54 = sshll.u32 %s2, 4
      %s55 = int_to_ptr.hbm [resolvable:$true] %s54
      %s56 = sshll.u32 [#allocation7], 4
      %s57 = int_to_ptr.vmem [resolvable:$true] %s56
      %59 = dma.hbm_to_vmem [thread:$0]  %s55, 128, %s57, [#allocation6]
    $region13: #{tpu_custom_call.1} parent=1 // pred_fallthru
      _
    // Predicated region
    $region14: #{tpu_custom_call.1} parent=1 // pred_check
      _
    $region15: #{tpu_custom_call.1} parent=1 // pred_check_branch
      %61 = sbr.rel (0) target = $region17
    $region16: #{tpu_custom_call.1} parent=1 // pred_region
      %63 = vsyncadd [#allocation9], 0
      %s64 = sshll.u32 %s3, 4
      %s65 = int_to_ptr.hbm [resolvable:$true] %s64
      %s66 = sshll.u32 [#allocation8], 4
      %s67 = int_to_ptr.vmem [resolvable:$true] %s66
      %72 = dma.hbm_to_vmem [thread:$0]  %s65, 512, %s67, [#allocation9], 128, 128, 8
    $region17: #{tpu_custom_call.1} parent=1 // pred_fallthru
      _
    // Predicated region
    $region18: #{tpu_custom_call.1} parent=1 // pred_check
      _
    $region19: #{tpu_custom_call.1} parent=1 // pred_check_branch
      %74 = sbr.rel (0) target = $region21
    $region20: #{tpu_custom_call.1} parent=1 // pred_region
      _
    $region21: #{tpu_custom_call.1} parent=1 // pred_fallthru
      _
    // Predicated region
    $region22: #{tpu_custom_call.1} parent=1 // pred_check
      _
    $region23: #{tpu_custom_call.1} parent=1 // pred_check_branch
      %76 = sbr.rel (0) target = $region25
    $region24: #{tpu_custom_call.1} parent=1 // pred_region
      %78 = vsyncadd [#allocation9], 0
      %s79 = sshll.u32 %s5, 4
      %s80 = int_to_ptr.hbm [resolvable:$true] %s79
      %s81 = sshll.u32 [#allocation10], 4
      %s82 = int_to_ptr.vmem [resolvable:$true] %s81
      %87 = dma.hbm_to_vmem [thread:$0]  %s80, 512, %s82, [#allocation9], 128, 128, 8
    $region25: #{tpu_custom_call.1} parent=1 // pred_fallthru
      _
    // Predicated region
    $region26: #{tpu_custom_call.1} parent=1 // pred_check
      _
    $region27: #{tpu_custom_call.1} parent=1 // pred_check_branch
      %89 = sbr.rel (0) target = $region29
    $region28: #{tpu_custom_call.1} parent=1 // pred_region
      %91 = vsyncadd [#allocation12], 0
      %s92 = sshll.u32 %s6, 4
      %s93 = int_to_ptr.hbm [resolvable:$true] %s92
      %s94 = sshll.u32 [#allocation11], 4
      %s95 = int_to_ptr.vmem [resolvable:$true] %s94
      %100 = dma.hbm_to_vmem [thread:$0]  %s93, 512, %s95, [#allocation12], 128, 128, 8
    $region29: #{tpu_custom_call.1} parent=1 // pred_fallthru
      _
    // Predicated region
    $region30: #{tpu_custom_call.1} parent=1 // pred_check
      _
    $region31: #{tpu_custom_call.1} parent=1 // pred_check_branch
      %102 = sbr.rel (0) target = $region33
    $region32: #{tpu_custom_call.1} parent=1 // pred_region
      _
    $region33: #{tpu_custom_call.1} parent=1 // pred_fallthru
      _
    // Predicated region
    $region34: #{tpu_custom_call.1} parent=1 // pred_check
      _
    $region35: #{tpu_custom_call.1} parent=1 // pred_check_branch
      %104 = sbr.rel (0) target = $region37
    $region36: #{tpu_custom_call.1} parent=1 // pred_region
      %106 = vsyncadd [#allocation12], 0
      %s107 = sshll.u32 %s8, 4
      %s108 = int_to_ptr.hbm [resolvable:$true] %s107
      %s109 = sshll.u32 [#allocation13], 4
      %s110 = int_to_ptr.vmem [resolvable:$true] %s109
      %115 = dma.hbm_to_vmem [thread:$0]  %s108, 1024, %s110, [#allocation12], 256, 256, 16
    $region37: #{tpu_custom_call.1} parent=1 // pred_fallthru
      _
    // Predicated region
    $region38: #{tpu_custom_call.1} parent=1 // pred_check
      _
    $region39: #{tpu_custom_call.1} parent=1 // pred_check_branch
      %117 = sbr.rel (0) target = $region41
    $region40: #{tpu_custom_call.1} parent=1 // pred_region
      %119 = vsyncadd [#allocation15], 0
      %s120 = sshll.u32 %s9, 4
      %s121 = int_to_ptr.hbm [resolvable:$true] %s120
      %s122 = sshll.u32 [#allocation14], 4
      %s123 = int_to_ptr.vmem [resolvable:$true] %s122
      %128 = dma.hbm_to_vmem [thread:$0]  %s121, 7168, %s123, [#allocation15], 256, 256, 16
    $region41: #{tpu_custom_call.1} parent=1 // pred_fallthru
      _
    // Predicated region
    $region42: #{tpu_custom_call.1} parent=1 // pred_check
      _
    $region43: #{tpu_custom_call.1} parent=1 // pred_check_branch
      %130 = sbr.rel (0) target = $region45
    $region44: #{tpu_custom_call.1} parent=1 // pred_region
      %132 = vsyncadd [#allocation15], 0
      %s133 = sshll.u32 %s10, 4
      %s134 = int_to_ptr.hbm [resolvable:$true] %s133
      %s135 = sshll.u32 [#allocation16], 4
      %s136 = int_to_ptr.vmem [resolvable:$true] %s135
      %141 = dma.hbm_to_vmem [thread:$0]  %s134, 3584, %s136, [#allocation15], 128, 128, 8
    $region45: #{tpu_custom_call.1} parent=1 // pred_fallthru
      _
    // Predicated region
    $region46: #{tpu_custom_call.1} parent=1 // pred_check
      _
    $region47: #{tpu_custom_call.1} parent=1 // pred_check_branch
      %143 = sbr.rel (0) target = $region49
    $region48: #{tpu_custom_call.1} parent=1 // pred_region
      _
    $region49: #{tpu_custom_call.1} parent=1 // pred_fallthru
      _
    // Predicated region
    $region50: #{tpu_custom_call.1} parent=1 // pred_check
      _
    $region51: #{tpu_custom_call.1} parent=1 // pred_check_branch
      %145 = sbr.rel (0) target = $region53
    $region52: #{tpu_custom_call.1} parent=1 // pred_region
      %147 = vsyncadd [#allocation18], 0
      %s148 = sshll.u32 %s12, 4
      %s149 = int_to_ptr.hbm [resolvable:$true] %s148
      %s150 = sshll.u32 [#allocation17], 4
      %s151 = int_to_ptr.vmem [resolvable:$true] %s150
      %156 = dma.hbm_to_vmem [thread:$0]  %s149, 7168, %s151, [#allocation18], 512, 512, 32
    $region53: #{tpu_custom_call.1} parent=1 // pred_fallthru
      _
    // Predicated region
    $region54: #{tpu_custom_call.1} parent=1 // pred_check
      _
    $region55: #{tpu_custom_call.1} parent=1 // pred_check_branch
      %158 = sbr.rel (0) target = $region57
    $region56: #{tpu_custom_call.1} parent=1 // pred_region
      _
    $region57: #{tpu_custom_call.1} parent=1 // pred_fallthru
      _
    // Predicated region
    $region58: #{tpu_custom_call.1} parent=1 // pred_check
      _
    $region59: #{tpu_custom_call.1} parent=1 // pred_check_branch
      %160 = sbr.rel (0) target = $region61
    $region60: #{tpu_custom_call.1} parent=1 // pred_region
      %162 = vsyncadd [#allocation18], 0
      %s164 = sshll.u32 %s14, 4
      %s165 = int_to_ptr.hbm [resolvable:$true] %s164
      %s166 = sshll.u32 [#allocation19], 4
      %s167 = int_to_ptr.vmem [resolvable:$true] %s166
      %169 = dma.hbm_to_vmem [thread:$0]  %s165, 512, %s167, [#allocation18]
    $region61: #{tpu_custom_call.1} parent=1 // pred_fallthru
      _
    // Predicated region
    $region62: #{tpu_custom_call.1} parent=1 // pred_check
      _
    $region63: #{tpu_custom_call.1} parent=1 // pred_check_branch
      %171 = sbr.rel (0) target = $region65
    $region64: #{tpu_custom_call.1} parent=1 // pred_region
      %173 = dma.done [#allocation3], 256
    $region65: #{tpu_custom_call.1} parent=1 // pred_fallthru
      _
    // Predicated region
    $region66: #{tpu_custom_call.1} parent=1 // pred_check
      _
    $region67: #{tpu_custom_call.1} parent=1 // pred_check_branch
      %175 = sbr.rel (0) target = $region69
    $region68: #{tpu_custom_call.1} parent=1 // pred_region
      %177 = dma.done [#allocation6], 128
    $region69: #{tpu_custom_call.1} parent=1 // pred_fallthru
      _
    // Predicated region
    $region70: #{tpu_custom_call.1} parent=1 // pred_check
      _
    $region71: #{tpu_custom_call.1} parent=1 // pred_check_branch
      %179 = sbr.rel (0) target = $region73
    $region72: #{tpu_custom_call.1} parent=1 // pred_region
      %181 = dma.done [#allocation6], 128
    $region73: #{tpu_custom_call.1} parent=1 // pred_fallthru
      _
    // Predicated region
    $region74: #{tpu_custom_call.1} parent=1 // pred_check
      _
    $region75: #{tpu_custom_call.1} parent=1 // pred_check_branch
      %183 = sbr.rel (0) target = $region77
    $region76: #{tpu_custom_call.1} parent=1 // pred_region
      %185 = dma.done [#allocation9], 512
    $region77: #{tpu_custom_call.1} parent=1 // pred_fallthru
      _
    // Predicated region
    $region78: #{tpu_custom_call.1} parent=1 // pred_check
      _
    $region79: #{tpu_custom_call.1} parent=1 // pred_check_branch
      %187 = sbr.rel (0) target = $region81
    $region80: #{tpu_custom_call.1} parent=1 // pred_region
      %189 = dma.done [#allocation9], 512
    $region81: #{tpu_custom_call.1} parent=1 // pred_fallthru
      _
    // Predicated region
    $region82: #{tpu_custom_call.1} parent=1 // pred_check
      _
    $region83: #{tpu_custom_call.1} parent=1 // pred_check_branch
      %191 = sbr.rel (0) target = $region85
    $region84: #{tpu_custom_call.1} parent=1 // pred_region
      %193 = dma.done [#allocation12], 512
    $region85: #{tpu_custom_call.1} parent=1 // pred_fallthru
      _
    // Predicated region
    $region86: #{tpu_custom_call.1} parent=1 // pred_check
      _
    $region87: #{tpu_custom_call.1} parent=1 // pred_check_branch
      %195 = sbr.rel (0) target = $region89
    $region88: #{tpu_custom_call.1} parent=1 // pred_region
      %197 = dma.done [#allocation12], 1024
    $region89: #{tpu_custom_call.1} parent=1 // pred_fallthru
      _
    // Predicated region
    $region90: #{tpu_custom_call.1} parent=1 // pred_check
      _
    $region91: #{tpu_custom_call.1} parent=1 // pred_check_branch
      %199 = sbr.rel (0) target = $region93
    $region92: #{tpu_custom_call.1} parent=1 // pred_region
      %201 = dma.done [#allocation15], 7168
    $region93: #{tpu_custom_call.1} parent=1 // pred_fallthru
      _
    // Predicated region
    $region94: #{tpu_custom_call.1} parent=1 // pred_check
      _
    $region95: #{tpu_custom_call.1} parent=1 // pred_check_branch
      %203 = sbr.rel (0) target = $region97
    $region96: #{tpu_custom_call.1} parent=1 // pred_region
      %205 = dma.done [#allocation15], 3584
    $region97: #{tpu_custom_call.1} parent=1 // pred_fallthru
      _
    // Predicated region
    $region98: #{tpu_custom_call.1} parent=1 // pred_check
      _
    $region99: #{tpu_custom_call.1} parent=1 // pred_check_branch
      %207 = sbr.rel (0) target = $region101
    $region100: #{tpu_custom_call.1} parent=1 // pred_region
      %209 = dma.done [#allocation18], 7168
    $region101: #{tpu_custom_call.1} parent=1 // pred_fallthru
      _
    // Predicated region
    $region102: #{tpu_custom_call.1} parent=1 // pred_check
      _
    $region103: #{tpu_custom_call.1} parent=1 // pred_check_branch
      %211 = sbr.rel (0) target = $region105
    $region104: #{tpu_custom_call.1} parent=1 // pred_region
      %213 = dma.done [#allocation18], 512
    $region105: #{tpu_custom_call.1} parent=1 // pred_fallthru
      _
    %v214 = vld [vmem:[#allocation5] sm:$0xff]
    %v215 = vld [vmem:[#allocation7] sm:$0xff]
    %v216 = vld [vmem:[#allocation2] sm:$0xff]
    %v217 = vld [vmem:[#allocation2 + $0x8] sm:$0xff]
    %v218 = vld [vmem:[#allocation8] sm:$0xff]
    %v219 = vld [vmem:[#allocation8 + $0x8] sm:$0xff]
    %v220 = vld [vmem:[#allocation8 + $0x10] sm:$0xff]
    %v221 = vld [vmem:[#allocation8 + $0x18] sm:$0xff]
    %v222 = vld [vmem:[%s4] sm:$0x1]
    %v224 = vperm.slane %v222, 0
    %vm226 = vcmask 261120
    %v228 = vsel %vm226, %v214, 0
    %230 = vmatpush.msra.mxu0 0.0
    %231 = vmatpush.msra.mxu0 0.0
    %232 = vmatpush.msra.mxu0 0.0
    %233 = vmatpush.msra.mxu0 0.0
    %234 = vmatpush.msra.mxu0 0.0
    %235 = vmatpush.msra.mxu0 0.0
    %236 = vmatpush.msra.mxu0 0.0
    %237 = vmatpush.msra.mxu0 0.0
    %238 = vmatpush.msra.mxu0 0.0
    %239 = vmatpush.msra.mxu0 0.0
    %240 = vmatpush.msra.mxu0 0.0
    %241 = vmatpush.msra.mxu0 0.0
    %242 = vmatpush.msra.mxu0 %v221
    %243 = vmatpush.msra.mxu0 %v220
    %244 = vmatpush.msra.mxu0 %v219
    %245 = vmatpush.msra.mxu0 %v218
    %246 = vmatmul.f32.gmra.mxu0 %v228
    %v247 = vpop.f32.mrf.mxu0
    %v248 = vadd.f32 %v224, %v247
    %249 = vdwg.mxu0
    %v250 = vadd.f32 %v248, 1.0
    %252 = vrot.lane.b32.xlu0 %v250, 96
    %v253 = vpop.permute.xlu0 %252
    %v255 = vmul.f32 %v250, %v253
    %257 = vrot.lane.b32.xlu0 %v248, 96
    %v258 = vpop.permute.xlu0 %257
    %v260 = vmul.f32 %v250, %v258
    %261 = vrot.lane.b32.xlu0 %v248, 64
    %v262 = vpop.permute.xlu0 %261
    %v264 = vadd.f32 %v260, %v262
    %v265 = vld [vmem:[#allocation11] sm:$0xff]
    %v266 = vld [vmem:[#allocation11 + $0x8] sm:$0xff]
    %v267 = vld [vmem:[#allocation11 + $0x10] sm:$0xff]
    %v268 = vld [vmem:[#allocation11 + $0x18] sm:$0xff]
    %v269 = vld [vmem:[#allocation10] sm:$0xff]
    %v270 = vld [vmem:[#allocation10 + $0x8] sm:$0xff]
    %v271 = vld [vmem:[#allocation10 + $0x10] sm:$0xff]
    %v272 = vld [vmem:[#allocation10 + $0x18] sm:$0xff]
    %v274 = vsel %vm226, %v215, 0
    %276 = vmatpush.msra.mxu0 0.0
    %277 = vmatpush.msra.mxu0 0.0
    %278 = vmatpush.msra.mxu0 0.0
    %279 = vmatpush.msra.mxu0 0.0
    %280 = vmatpush.msra.mxu0 0.0
    %281 = vmatpush.msra.mxu0 0.0
    %282 = vmatpush.msra.mxu0 0.0
    %283 = vmatpush.msra.mxu0 0.0
    %284 = vmatpush.msra.mxu0 0.0
    %285 = vmatpush.msra.mxu0 0.0
    %286 = vmatpush.msra.mxu0 0.0
    %287 = vmatpush.msra.mxu0 0.0
    %288 = vmatpush.msra.mxu0 %v272
    %289 = vmatpush.msra.mxu0 %v271
    %290 = vmatpush.msra.mxu0 %v270
    %291 = vmatpush.msra.mxu0 %v269
    %292 = vmatmul.f32.gmra.mxu0 %v274
    %v293 = vpop.f32.mrf.mxu0
    %v294 = vadd.f32 0.0, %v293
    %295 = vdwg.mxu0
    %297 = vrot.lane.b32.xlu0 %v264, 96
    %v298 = vpop.permute.xlu0 %297
    %v299 = vsel %vm226, %v298, 0
    %301 = vmatpush.msra.mxu0 0.0
    %302 = vmatpush.msra.mxu0 0.0
    %303 = vmatpush.msra.mxu0 0.0
    %304 = vmatpush.msra.mxu0 0.0
    %305 = vmatpush.msra.mxu0 0.0
    %306 = vmatpush.msra.mxu0 0.0
    %307 = vmatpush.msra.mxu0 0.0
    %308 = vmatpush.msra.mxu0 0.0
    %309 = vmatpush.msra.mxu0 0.0
    %310 = vmatpush.msra.mxu0 0.0
    %311 = vmatpush.msra.mxu0 0.0
    %312 = vmatpush.msra.mxu0 0.0
    %313 = vmatpush.msra.mxu0 %v268
    %314 = vmatpush.msra.mxu0 %v267
    %315 = vmatpush.msra.mxu0 %v266
    %316 = vmatpush.msra.mxu0 %v265
    %317 = vmatmul.f32.gmra.mxu0 %v299
    %v318 = vpop.f32.mrf.mxu0
    %v319 = vadd.f32 %v294, %v318
    %320 = vdwg.mxu0
    %v321 = vld [vmem:[%s7] sm:$0x1]
    %v323 = vperm.slane %v321, 0
    %v325 = vadd.f32 %v319, %v323
    %v326 = vld [vmem:[#allocation13] sm:$0xff]
    %v327 = vld [vmem:[#allocation13 + $0x8] sm:$0xff]
    %v328 = vld [vmem:[#allocation13 + $0x10] sm:$0xff]
    %v329 = vld [vmem:[#allocation13 + $0x18] sm:$0xff]
    %v330 = vld [vmem:[#allocation13 + $0x20] sm:$0xff]
    %v331 = vld [vmem:[#allocation13 + $0x28] sm:$0xff]
    %v332 = vld [vmem:[#allocation13 + $0x30] sm:$0xff]
    %v333 = vld [vmem:[#allocation13 + $0x38] sm:$0xff]
    %v335 = vsel %vm226, %v255, 0
    %337 = vmatpush.msra.mxu0 0.0
    %338 = vmatpush.msra.mxu0 0.0
    %339 = vmatpush.msra.mxu0 0.0
    %340 = vmatpush.msra.mxu0 0.0
    %341 = vmatpush.msra.mxu0 0.0
    %342 = vmatpush.msra.mxu0 0.0
    %343 = vmatpush.msra.mxu0 0.0
    %344 = vmatpush.msra.mxu0 0.0
    %345 = vmatpush.msra.mxu0 0.0
    %346 = vmatpush.msra.mxu0 0.0
    %347 = vmatpush.msra.mxu0 0.0
    %348 = vmatpush.msra.mxu0 0.0
    %349 = vmatpush.msra.mxu0 %v332
    %350 = vmatpush.msra.mxu0 %v330
    %351 = vmatpush.msra.mxu0 %v328
    %352 = vmatpush.msra.mxu0 %v326
    %353 = vmatmul.f32.gmra.mxu0 %v335
    %v354 = vpop.f32.mrf.mxu0
    %v355 = vadd.f32 0.0, %v354
    %356 = vdwg.mxu0
    %357 = vmatpush.msra.mxu0 0.0
    %358 = vmatpush.msra.mxu0 0.0
    %359 = vmatpush.msra.mxu0 0.0
    %360 = vmatpush.msra.mxu0 0.0
    %361 = vmatpush.msra.mxu0 0.0
    %362 = vmatpush.msra.mxu0 0.0
    %363 = vmatpush.msra.mxu0 0.0
    %364 = vmatpush.msra.mxu0 0.0
    %365 = vmatpush.msra.mxu0 0.0
    %366 = vmatpush.msra.mxu0 0.0
    %367 = vmatpush.msra.mxu0 0.0
    %368 = vmatpush.msra.mxu0 0.0
    %369 = vmatpush.msra.mxu0 %v333
    %370 = vmatpush.msra.mxu0 %v331
    %371 = vmatpush.msra.mxu0 %v329
    %372 = vmatpush.msra.mxu0 %v327
    %373 = vmatmul.f32.gmra.mxu0 %v335
    %v374 = vpop.f32.mrf.mxu0
    %v375 = vadd.f32 0.0, %v374
    %376 = vdwg.mxu0
    %v378 = vsel %vm226, %v325, 0
    %380 = vmatpush.msra.mxu0 0.0
    %381 = vmatpush.msra.mxu0 0.0
    %382 = vmatpush.msra.mxu0 0.0
    %383 = vmatpush.msra.mxu0 0.0
    %384 = vmatpush.msra.mxu0 0.0
    %385 = vmatpush.msra.mxu0 0.0
    %386 = vmatpush.msra.mxu0 0.0
    %387 = vmatpush.msra.mxu0 0.0
    %388 = vmatpush.msra.mxu0 0.0
    %389 = vmatpush.msra.mxu0 0.0
    %390 = vmatpush.msra.mxu0 0.0
    %391 = vmatpush.msra.mxu0 0.0
    %392 = vmatpush.msra.mxu0 %v332
    %393 = vmatpush.msra.mxu0 %v330
    %394 = vmatpush.msra.mxu0 %v328
    %395 = vmatpush.msra.mxu0 %v326
    %396 = vmatmul.f32.gmra.mxu0 %v378
    %v397 = vpop.f32.mrf.mxu0
    %v398 = vadd.f32 0.0, %v397
    %399 = vdwg.mxu0
    %400 = vmatpush.msra.mxu0 0.0
    %401 = vmatpush.msra.mxu0 0.0
    %402 = vmatpush.msra.mxu0 0.0
    %403 = vmatpush.msra.mxu0 0.0
    %404 = vmatpush.msra.mxu0 0.0
    %405 = vmatpush.msra.mxu0 0.0
    %406 = vmatpush.msra.mxu0 0.0
    %407 = vmatpush.msra.mxu0 0.0
    %408 = vmatpush.msra.mxu0 0.0
    %409 = vmatpush.msra.mxu0 0.0
    %410 = vmatpush.msra.mxu0 0.0
    %411 = vmatpush.msra.mxu0 0.0
    %412 = vmatpush.msra.mxu0 %v333
    %413 = vmatpush.msra.mxu0 %v331
    %414 = vmatpush.msra.mxu0 %v329
    %415 = vmatpush.msra.mxu0 %v327
    %416 = vmatmul.f32.gmra.mxu0 %v378
    %v417 = vpop.f32.mrf.mxu0
    %v418 = vadd.f32 0.0, %v417
    %419 = vdwg.mxu0
    %v420 = vmul.f32 %v355, %v216
    %v421 = vmul.f32 %v375, %v217
    %v422 = vld [vmem:[#allocation14] sm:$0xff]
    %v423 = vld [vmem:[#allocation14 + $0x8] sm:$0xff]
    %v424 = vld [vmem:[#allocation14 + $0x10] sm:$0xff]
    %v425 = vld [vmem:[#allocation14 + $0x18] sm:$0xff]
    %v426 = vld [vmem:[#allocation14 + $0x20] sm:$0xff]
    %v427 = vld [vmem:[#allocation14 + $0x28] sm:$0xff]
    %v428 = vld [vmem:[#allocation14 + $0x30] sm:$0xff]
    %v429 = vld [vmem:[#allocation14 + $0x38] sm:$0xff]
    %v430 = vld [vmem:[#allocation14 + $0x40] sm:$0xff]
    %v431 = vld [vmem:[#allocation14 + $0x48] sm:$0xff]
    %v432 = vld [vmem:[#allocation14 + $0x50] sm:$0xff]
    %v433 = vld [vmem:[#allocation14 + $0x58] sm:$0xff]
    %v434 = vld [vmem:[#allocation14 + $0x60] sm:$0xff]
    %v435 = vld [vmem:[#allocation14 + $0x68] sm:$0xff]
    %v436 = vld [vmem:[#allocation14 + $0x70] sm:$0xff]
    %v437 = vld [vmem:[#allocation14 + $0x78] sm:$0xff]
    %v438 = vld [vmem:[#allocation14 + $0x80] sm:$0xff]
    %v439 = vld [vmem:[#allocation14 + $0x88] sm:$0xff]
    %v440 = vld [vmem:[#allocation14 + $0x90] sm:$0xff]
    %v441 = vld [vmem:[#allocation14 + $0x98] sm:$0xff]
    %v442 = vld [vmem:[#allocation14 + $0xa0] sm:$0xff]
    %v443 = vld [vmem:[#allocation14 + $0xa8] sm:$0xff]
    %v444 = vld [vmem:[#allocation14 + $0xb0] sm:$0xff]
    %v445 = vld [vmem:[#allocation14 + $0xb8] sm:$0xff]
    %v446 = vld [vmem:[#allocation14 + $0xc0] sm:$0xff]
    %v447 = vld [vmem:[#allocation14 + $0xc8] sm:$0xff]
    %v448 = vld [vmem:[#allocation14 + $0xd0] sm:$0xff]
    %v449 = vld [vmem:[#allocation14 + $0xd8] sm:$0xff]
    %v450 = vld [vmem:[#allocation14 + $0xe0] sm:$0xff]
    %v451 = vld [vmem:[#allocation14 + $0xe8] sm:$0xff]
    %v452 = vld [vmem:[#allocation14 + $0xf0] sm:$0xff]
    %v453 = vld [vmem:[#allocation14 + $0xf8] sm:$0xff]
    %v454 = vld [vmem:[#allocation14 + $0x100] sm:$0xff]
    %v455 = vld [vmem:[#allocation14 + $0x108] sm:$0xff]
    %v456 = vld [vmem:[#allocation14 + $0x110] sm:$0xff]
    %v457 = vld [vmem:[#allocation14 + $0x118] sm:$0xff]
    %v458 = vld [vmem:[#allocation14 + $0x120] sm:$0xff]
    %v459 = vld [vmem:[#allocation14 + $0x128] sm:$0xff]
    %v460 = vld [vmem:[#allocation14 + $0x130] sm:$0xff]
    %v461 = vld [vmem:[#allocation14 + $0x138] sm:$0xff]
    %v462 = vld [vmem:[#allocation14 + $0x140] sm:$0xff]
    %v463 = vld [vmem:[#allocation14 + $0x148] sm:$0xff]
    %v464 = vld [vmem:[#allocation14 + $0x150] sm:$0xff]
    %v465 = vld [vmem:[#allocation14 + $0x158] sm:$0xff]
    %v466 = vld [vmem:[#allocation14 + $0x160] sm:$0xff]
    %v467 = vld [vmem:[#allocation14 + $0x168] sm:$0xff]
    %v468 = vld [vmem:[#allocation14 + $0x170] sm:$0xff]
    %v469 = vld [vmem:[#allocation14 + $0x178] sm:$0xff]
    %v470 = vld [vmem:[#allocation14 + $0x180] sm:$0xff]
    %v471 = vld [vmem:[#allocation14 + $0x188] sm:$0xff]
    %v472 = vld [vmem:[#allocation14 + $0x190] sm:$0xff]
    %v473 = vld [vmem:[#allocation14 + $0x198] sm:$0xff]
    %v474 = vld [vmem:[#allocation14 + $0x1a0] sm:$0xff]
    %v475 = vld [vmem:[#allocation14 + $0x1a8] sm:$0xff]
    %v476 = vld [vmem:[#allocation14 + $0x1b0] sm:$0xff]
    %v477 = vld [vmem:[#allocation14 + $0x1b8] sm:$0xff]
    %vm478 = vcmask 785408
    %v480 = vsel %vm478, %v421, 0
    %482 = vmatpush.msra.mxu0 %v452
    %483 = vmatpush.msra.mxu0 %v450
    %484 = vmatpush.msra.mxu0 %v448
    %485 = vmatpush.msra.mxu0 %v446
    %486 = vmatpush.msra.mxu0 %v444
    %487 = vmatpush.msra.mxu0 %v442
    %488 = vmatpush.msra.mxu0 %v440
    %489 = vmatpush.msra.mxu0 %v438
    %490 = vmatpush.msra.mxu0 %v436
    %491 = vmatpush.msra.mxu0 %v434
    %492 = vmatpush.msra.mxu0 %v432
    %493 = vmatpush.msra.mxu0 %v430
    %494 = vmatpush.msra.mxu0 %v428
    %495 = vmatpush.msra.mxu0 %v426
    %496 = vmatpush.msra.mxu0 %v424
    %497 = vmatpush.msra.mxu0 %v422
    %498 = vmatmul.f32.gmra.mxu0 %v420
    %v499 = vpop.f32.mrf.mxu0
    %v500 = vadd.f32 %v398, %v499
    %501 = vdwg.mxu0
    %502 = vmatpush.msra.mxu0 0.0
    %503 = vmatpush.msra.mxu0 0.0
    %504 = vmatpush.msra.mxu0 0.0
    %505 = vmatpush.msra.mxu0 0.0
    %506 = vmatpush.msra.mxu0 %v476
    %507 = vmatpush.msra.mxu0 %v474
    %508 = vmatpush.msra.mxu0 %v472
    %509 = vmatpush.msra.mxu0 %v470
    %510 = vmatpush.msra.mxu0 %v468
    %511 = vmatpush.msra.mxu0 %v466
    %512 = vmatpush.msra.mxu0 %v464
    %513 = vmatpush.msra.mxu0 %v462
    %514 = vmatpush.msra.mxu0 %v460
    %515 = vmatpush.msra.mxu0 %v458
    %516 = vmatpush.msra.mxu0 %v456
    %517 = vmatpush.msra.mxu0 %v454
    %518 = vmatmul.f32.gmra.mxu0 %v480
    %v519 = vpop.f32.mrf.mxu0
    %v520 = vadd.f32 %v500, %v519
    %521 = vdwg.mxu0
    %522 = vmatpush.msra.mxu0 %v453
    %523 = vmatpush.msra.mxu0 %v451
    %524 = vmatpush.msra.mxu0 %v449
    %525 = vmatpush.msra.mxu0 %v447
    %526 = vmatpush.msra.mxu0 %v445
    %527 = vmatpush.msra.mxu0 %v443
    %528 = vmatpush.msra.mxu0 %v441
    %529 = vmatpush.msra.mxu0 %v439
    %530 = vmatpush.msra.mxu0 %v437
    %531 = vmatpush.msra.mxu0 %v435
    %532 = vmatpush.msra.mxu0 %v433
    %533 = vmatpush.msra.mxu0 %v431
    %534 = vmatpush.msra.mxu0 %v429
    %535 = vmatpush.msra.mxu0 %v427
    %536 = vmatpush.msra.mxu0 %v425
    %537 = vmatpush.msra.mxu0 %v423
    %538 = vmatmul.f32.gmra.mxu0 %v420
    %v539 = vpop.f32.mrf.mxu0
    %v540 = vadd.f32 %v418, %v539
    %541 = vdwg.mxu0
    %542 = vmatpush.msra.mxu0 0.0
    %543 = vmatpush.msra.mxu0 0.0
    %544 = vmatpush.msra.mxu0 0.0
    %545 = vmatpush.msra.mxu0 0.0
    %546 = vmatpush.msra.mxu0 %v477
    %547 = vmatpush.msra.mxu0 %v475
    %548 = vmatpush.msra.mxu0 %v473
    %549 = vmatpush.msra.mxu0 %v471
    %550 = vmatpush.msra.mxu0 %v469
    %551 = vmatpush.msra.mxu0 %v467
    %552 = vmatpush.msra.mxu0 %v465
    %553 = vmatpush.msra.mxu0 %v463
    %554 = vmatpush.msra.mxu0 %v461
    %555 = vmatpush.msra.mxu0 %v459
    %556 = vmatpush.msra.mxu0 %v457
    %557 = vmatpush.msra.mxu0 %v455
    %558 = vmatmul.f32.gmra.mxu0 %v480
    %v559 = vpop.f32.mrf.mxu0
    %v560 = vadd.f32 %v540, %v559
    %561 = vdwg.mxu0
    %v562 = vmax.f32 %v520, 0.0
    %v563 = vmax.f32 %v560, 0.0
    %v564 = vld [vmem:[#allocation16] sm:$0xff]
    %v565 = vld [vmem:[#allocation16 + $0x8] sm:$0xff]
    %v566 = vld [vmem:[#allocation16 + $0x10] sm:$0xff]
    %v567 = vld [vmem:[#allocation16 + $0x18] sm:$0xff]
    %v568 = vld [vmem:[#allocation16 + $0x20] sm:$0xff]
    %v569 = vld [vmem:[#allocation16 + $0x28] sm:$0xff]
    %v570 = vld [vmem:[#allocation16 + $0x30] sm:$0xff]
    %v571 = vld [vmem:[#allocation16 + $0x38] sm:$0xff]
    %v572 = vld [vmem:[#allocation16 + $0x40] sm:$0xff]
    %v573 = vld [vmem:[#allocation16 + $0x48] sm:$0xff]
    %v574 = vld [vmem:[#allocation16 + $0x50] sm:$0xff]
    %v575 = vld [vmem:[#allocation16 + $0x58] sm:$0xff]
    %v576 = vld [vmem:[#allocation16 + $0x60] sm:$0xff]
    %v577 = vld [vmem:[#allocation16 + $0x68] sm:$0xff]
    %v578 = vld [vmem:[#allocation16 + $0x70] sm:$0xff]
    %v579 = vld [vmem:[#allocation16 + $0x78] sm:$0xff]
    %v580 = vld [vmem:[#allocation16 + $0x80] sm:$0xff]
    %v581 = vld [vmem:[#allocation16 + $0x88] sm:$0xff]
    %v582 = vld [vmem:[#allocation16 + $0x90] sm:$0xff]
    %v583 = vld [vmem:[#allocation16 + $0x98] sm:$0xff]
    %v584 = vld [vmem:[#allocation16 + $0xa0] sm:$0xff]
    %v585 = vld [vmem:[#allocation16 + $0xa8] sm:$0xff]
    %v586 = vld [vmem:[#allocation16 + $0xb0] sm:$0xff]
    %v587 = vld [vmem:[#allocation16 + $0xb8] sm:$0xff]
    %v588 = vld [vmem:[#allocation16 + $0xc0] sm:$0xff]
    %v589 = vld [vmem:[#allocation16 + $0xc8] sm:$0xff]
    %v590 = vld [vmem:[#allocation16 + $0xd0] sm:$0xff]
    %v591 = vld [vmem:[#allocation16 + $0xd8] sm:$0xff]
    %v592 = vld [vmem:[%s11] sm:$0x1]
    %v594 = vperm.slane %v592, 0
    %v597 = vsel %vm478, %v563, 0
    %599 = vmatpush.msra.mxu0 %v579
    %600 = vmatpush.msra.mxu0 %v578
    %601 = vmatpush.msra.mxu0 %v577
    %602 = vmatpush.msra.mxu0 %v576
    %603 = vmatpush.msra.mxu0 %v575
    %604 = vmatpush.msra.mxu0 %v574
    %605 = vmatpush.msra.mxu0 %v573
    %606 = vmatpush.msra.mxu0 %v572
    %607 = vmatpush.msra.mxu0 %v571
    %608 = vmatpush.msra.mxu0 %v570
    %609 = vmatpush.msra.mxu0 %v569
    %610 = vmatpush.msra.mxu0 %v568
    %611 = vmatpush.msra.mxu0 %v567
    %612 = vmatpush.msra.mxu0 %v566
    %613 = vmatpush.msra.mxu0 %v565
    %614 = vmatpush.msra.mxu0 %v564
    %615 = vmatmul.f32.gmra.mxu0 %v562
    %v616 = vpop.f32.mrf.mxu0
    %v617 = vadd.f32 %v594, %v616
    %618 = vdwg.mxu0
    %619 = vmatpush.msra.mxu0 0.0
    %620 = vmatpush.msra.mxu0 0.0
    %621 = vmatpush.msra.mxu0 0.0
    %622 = vmatpush.msra.mxu0 0.0
    %623 = vmatpush.msra.mxu0 %v591
    %624 = vmatpush.msra.mxu0 %v590
    %625 = vmatpush.msra.mxu0 %v589
    %626 = vmatpush.msra.mxu0 %v588
    %627 = vmatpush.msra.mxu0 %v587
    %628 = vmatpush.msra.mxu0 %v586
    %629 = vmatpush.msra.mxu0 %v585
    %630 = vmatpush.msra.mxu0 %v584
    %631 = vmatpush.msra.mxu0 %v583
    %632 = vmatpush.msra.mxu0 %v582
    %633 = vmatpush.msra.mxu0 %v581
    %634 = vmatpush.msra.mxu0 %v580
    %635 = vmatmul.f32.gmra.mxu0 %v597
    %v636 = vpop.f32.mrf.mxu0
    %v637 = vadd.f32 %v617, %v636
    %638 = vdwg.mxu0
    %v639 = vmax.f32 %v637, 0.0
    %v640 = vld [vmem:[#allocation17] sm:$0xff]
    %v641 = vld [vmem:[#allocation17 + $0x8] sm:$0xff]
    %v642 = vld [vmem:[#allocation17 + $0x10] sm:$0xff]
    %v643 = vld [vmem:[#allocation17 + $0x18] sm:$0xff]
    %v644 = vld [vmem:[#allocation17 + $0x20] sm:$0xff]
    %v645 = vld [vmem:[#allocation17 + $0x28] sm:$0xff]
    %v646 = vld [vmem:[#allocation17 + $0x30] sm:$0xff]
    %v647 = vld [vmem:[#allocation17 + $0x38] sm:$0xff]
    %v648 = vld [vmem:[#allocation17 + $0x40] sm:$0xff]
    %v649 = vld [vmem:[#allocation17 + $0x48] sm:$0xff]
    %v650 = vld [vmem:[#allocation17 + $0x50] sm:$0xff]
    %v651 = vld [vmem:[#allocation17 + $0x58] sm:$0xff]
    %v652 = vld [vmem:[#allocation17 + $0x60] sm:$0xff]
    %v653 = vld [vmem:[#allocation17 + $0x68] sm:$0xff]
    %v654 = vld [vmem:[#allocation17 + $0x70] sm:$0xff]
    %v655 = vld [vmem:[#allocation17 + $0x78] sm:$0xff]
    %v656 = vld [vmem:[#allocation17 + $0x80] sm:$0xff]
    %v657 = vld [vmem:[#allocation17 + $0x88] sm:$0xff]
    %v658 = vld [vmem:[#allocation17 + $0x90] sm:$0xff]
    %v659 = vld [vmem:[#allocation17 + $0x98] sm:$0xff]
    %v660 = vld [vmem:[#allocation17 + $0xa0] sm:$0xff]
    %v661 = vld [vmem:[#allocation17 + $0xa8] sm:$0xff]
    %v662 = vld [vmem:[#allocation17 + $0xb0] sm:$0xff]
    %v663 = vld [vmem:[#allocation17 + $0xb8] sm:$0xff]
    %v664 = vld [vmem:[#allocation17 + $0xc0] sm:$0xff]
    %v665 = vld [vmem:[#allocation17 + $0xc8] sm:$0xff]
    %v666 = vld [vmem:[#allocation17 + $0xd0] sm:$0xff]
    %v667 = vld [vmem:[#allocation17 + $0xd8] sm:$0xff]
    %v668 = vld [vmem:[#allocation17 + $0xe0] sm:$0xff]
    %v669 = vld [vmem:[#allocation17 + $0xe8] sm:$0xff]
    %v670 = vld [vmem:[#allocation17 + $0xf0] sm:$0xff]
    %v671 = vld [vmem:[#allocation17 + $0xf8] sm:$0xff]
    %v672 = vld [vmem:[#allocation17 + $0x100] sm:$0xff]
    %v673 = vld [vmem:[#allocation17 + $0x108] sm:$0xff]
    %v674 = vld [vmem:[#allocation17 + $0x110] sm:$0xff]
    %v675 = vld [vmem:[#allocation17 + $0x118] sm:$0xff]
    %v676 = vld [vmem:[#allocation17 + $0x120] sm:$0xff]
    %v677 = vld [vmem:[#allocation17 + $0x128] sm:$0xff]
    %v678 = vld [vmem:[#allocation17 + $0x130] sm:$0xff]
    %v679 = vld [vmem:[#allocation17 + $0x138] sm:$0xff]
    %v680 = vld [vmem:[#allocation17 + $0x140] sm:$0xff]
    %v681 = vld [vmem:[#allocation17 + $0x148] sm:$0xff]
    %v682 = vld [vmem:[#allocation17 + $0x150] sm:$0xff]
    %v683 = vld [vmem:[#allocation17 + $0x158] sm:$0xff]
    %v684 = vld [vmem:[#allocation17 + $0x160] sm:$0xff]
    %v685 = vld [vmem:[#allocation17 + $0x168] sm:$0xff]
    %v686 = vld [vmem:[#allocation17 + $0x170] sm:$0xff]
    %v687 = vld [vmem:[#allocation17 + $0x178] sm:$0xff]
    %v688 = vld [vmem:[#allocation17 + $0x180] sm:$0xff]
    %v689 = vld [vmem:[#allocation17 + $0x188] sm:$0xff]
    %v690 = vld [vmem:[#allocation17 + $0x190] sm:$0xff]
    %v691 = vld [vmem:[#allocation17 + $0x198] sm:$0xff]
    %v692 = vld [vmem:[#allocation17 + $0x1a0] sm:$0xff]
    %v693 = vld [vmem:[#allocation17 + $0x1a8] sm:$0xff]
    %v694 = vld [vmem:[#allocation17 + $0x1b0] sm:$0xff]
    %v695 = vld [vmem:[#allocation17 + $0x1b8] sm:$0xff]
    %v696 = vld [vmem:[%s13] sm:$0xf]
    %v698 = vperm.slane %v696, 0
    %v699 = vperm.slane %v696, 1
    %v700 = vperm.slane %v696, 2
    %v701 = vperm.slane %v696, 3
    %vm706 = vcmask 916480
    %v708 = vsel %vm706, %v639, 0
    %710 = vmatpush.msra.mxu0 0.0
    %711 = vmatpush.msra.mxu0 0.0
    %712 = vmatpush.msra.mxu0 %v692
    %713 = vmatpush.msra.mxu0 %v688
    %714 = vmatpush.msra.mxu0 %v684
    %715 = vmatpush.msra.mxu0 %v680
    %716 = vmatpush.msra.mxu0 %v676
    %717 = vmatpush.msra.mxu0 %v672
    %718 = vmatpush.msra.mxu0 %v668
    %719 = vmatpush.msra.mxu0 %v664
    %720 = vmatpush.msra.mxu0 %v660
    %721 = vmatpush.msra.mxu0 %v656
    %722 = vmatpush.msra.mxu0 %v652
    %723 = vmatpush.msra.mxu0 %v648
    %724 = vmatpush.msra.mxu0 %v644
    %725 = vmatpush.msra.mxu0 %v640
    %726 = vmatmul.f32.gmra.mxu0 %v708
    %v727 = vpop.f32.mrf.mxu0
    %v728 = vadd.f32 %v698, %v727
    %729 = vdwg.mxu0
    %730 = vmatpush.msra.mxu0 0.0
    %731 = vmatpush.msra.mxu0 0.0
    %732 = vmatpush.msra.mxu0 %v693
    %733 = vmatpush.msra.mxu0 %v689
    %734 = vmatpush.msra.mxu0 %v685
    %735 = vmatpush.msra.mxu0 %v681
    %736 = vmatpush.msra.mxu0 %v677
    %737 = vmatpush.msra.mxu0 %v673
    %738 = vmatpush.msra.mxu0 %v669
    %739 = vmatpush.msra.mxu0 %v665
    %740 = vmatpush.msra.mxu0 %v661
    %741 = vmatpush.msra.mxu0 %v657
    %742 = vmatpush.msra.mxu0 %v653
    %743 = vmatpush.msra.mxu0 %v649
    %744 = vmatpush.msra.mxu0 %v645
    %745 = vmatpush.msra.mxu0 %v641
    %746 = vmatmul.f32.gmra.mxu0 %v708
    %v747 = vpop.f32.mrf.mxu0
    %v748 = vadd.f32 %v699, %v747
    %749 = vdwg.mxu0
    %750 = vmatpush.msra.mxu0 0.0
    %751 = vmatpush.msra.mxu0 0.0
    %752 = vmatpush.msra.mxu0 %v694
    %753 = vmatpush.msra.mxu0 %v690
    %754 = vmatpush.msra.mxu0 %v686
    %755 = vmatpush.msra.mxu0 %v682
    %756 = vmatpush.msra.mxu0 %v678
    %757 = vmatpush.msra.mxu0 %v674
    %758 = vmatpush.msra.mxu0 %v670
    %759 = vmatpush.msra.mxu0 %v666
    %760 = vmatpush.msra.mxu0 %v662
    %761 = vmatpush.msra.mxu0 %v658
    %762 = vmatpush.msra.mxu0 %v654
    %763 = vmatpush.msra.mxu0 %v650
    %764 = vmatpush.msra.mxu0 %v646
    %765 = vmatpush.msra.mxu0 %v642
    %766 = vmatmul.f32.gmra.mxu0 %v708
    %v767 = vpop.f32.mrf.mxu0
    %v768 = vadd.f32 %v700, %v767
    %769 = vdwg.mxu0
    %770 = vmatpush.msra.mxu0 0.0
    %771 = vmatpush.msra.mxu0 0.0
    %772 = vmatpush.msra.mxu0 %v695
    %773 = vmatpush.msra.mxu0 %v691
    %774 = vmatpush.msra.mxu0 %v687
    %775 = vmatpush.msra.mxu0 %v683
    %776 = vmatpush.msra.mxu0 %v679
    %777 = vmatpush.msra.mxu0 %v675
    %778 = vmatpush.msra.mxu0 %v671
    %779 = vmatpush.msra.mxu0 %v667
    %780 = vmatpush.msra.mxu0 %v663
    %781 = vmatpush.msra.mxu0 %v659
    %782 = vmatpush.msra.mxu0 %v655
    %783 = vmatpush.msra.mxu0 %v651
    %784 = vmatpush.msra.mxu0 %v647
    %785 = vmatpush.msra.mxu0 %v643
    %786 = vmatmul.f32.gmra.mxu0 %v708
    %v787 = vpop.f32.mrf.mxu0
    %v788 = vadd.f32 %v701, %v787
    %789 = vdwg.mxu0
    %vm790 = vcmask 523264
    %v791 = vsel %vm790, %v728, -inf
    %792 = vmax.xlane.f32.xlu0 %v791
    %v793 = vpop.xlane.xlu0 %792
    %vm794 = vcmask 1048064
    %v795 = vsel %vm794, %v728, -inf
    %796 = vmax.xlane.f32.xlu0 %v795
    %v797 = vpop.xlane.xlu0 %796
    %v798 = vsel %vm790, %v748, -inf
    %799 = vmax.xlane.f32.xlu0 %v798
    %v800 = vpop.xlane.xlu0 %799
    %v801 = vsel %vm794, %v748, -inf
    %802 = vmax.xlane.f32.xlu0 %v801
    %v803 = vpop.xlane.xlu0 %802
    %v804 = vsel %vm790, %v768, -inf
    %805 = vmax.xlane.f32.xlu0 %v804
    %v806 = vpop.xlane.xlu0 %805
    %v807 = vsel %vm794, %v768, -inf
    %808 = vmax.xlane.f32.xlu0 %v807
    %v809 = vpop.xlane.xlu0 %808
    %v810 = vsel %vm790, %v788, -inf
    %811 = vmax.xlane.f32.xlu0 %v810
    %v812 = vpop.xlane.xlu0 %811
    %vm813 = vcmask 7168
    %v814 = vsel %vm813, %v793, %v797
    %vm815 = vcmask 15360
    %v816 = vsel %vm815, %v814, %v800
    %vm817 = vcmask 23552
    %v818 = vsel %vm817, %v816, %v803
    %vm819 = vcmask 31744
    %v820 = vsel %vm819, %v818, %v806
    %vm821 = vcmask 39936
    %v822 = vsel %vm821, %v820, %v809
    %vm823 = vcmask 48128
    %v824 = vsel %vm823, %v822, %v812
    %v825 = vld [vmem:[#allocation19] sm:$0x7f]
    %v826 = vld [vmem:[#allocation19 + $0x8] sm:$0x7f]
    %v827 = vld [vmem:[#allocation19 + $0x10] sm:$0x7f]
    %v828 = vld [vmem:[#allocation19 + $0x18] sm:$0x7f]
    %vm829 = vcmask 56320
    %v831 = vsel %vm829, %v824, 0
    %vm833 = vcmask 1046528
    %v835 = vsel %vm833, %v825, 0
    %v838 = vsel %vm833, %v826, 0
    %v841 = vsel %vm833, %v827, 0
    %v844 = vsel %vm833, %v828, 0
    %846 = vmatpush.msra.mxu0 0.0
    %847 = vmatpush.msra.mxu0 0.0
    %848 = vmatpush.msra.mxu0 0.0
    %849 = vmatpush.msra.mxu0 0.0
    %850 = vmatpush.msra.mxu0 0.0
    %851 = vmatpush.msra.mxu0 0.0
    %852 = vmatpush.msra.mxu0 0.0
    %853 = vmatpush.msra.mxu0 0.0
    %854 = vmatpush.msra.mxu0 0.0
    %855 = vmatpush.msra.mxu0 0.0
    %856 = vmatpush.msra.mxu0 0.0
    %857 = vmatpush.msra.mxu0 0.0
    %858 = vmatpush.msra.mxu0 0.0
    %859 = vmatpush.msra.mxu0 0.0
    %860 = vmatpush.msra.mxu0 0.0
    %861 = vmatpush.msra.mxu0 %v835
    %862 = vmatmul.f32.gmra.mxu0 %v831
    %v863 = vpop.f32.mrf.mxu0
    %v864 = vadd.f32 0.0, %v863
    %865 = vdwg.mxu0
    %866 = vmatpush.msra.mxu0 0.0
    %867 = vmatpush.msra.mxu0 0.0
    %868 = vmatpush.msra.mxu0 0.0
    %869 = vmatpush.msra.mxu0 0.0
    %870 = vmatpush.msra.mxu0 0.0
    %871 = vmatpush.msra.mxu0 0.0
    %872 = vmatpush.msra.mxu0 0.0
    %873 = vmatpush.msra.mxu0 0.0
    %874 = vmatpush.msra.mxu0 0.0
    %875 = vmatpush.msra.mxu0 0.0
    %876 = vmatpush.msra.mxu0 0.0
    %877 = vmatpush.msra.mxu0 0.0
    %878 = vmatpush.msra.mxu0 0.0
    %879 = vmatpush.msra.mxu0 0.0
    %880 = vmatpush.msra.mxu0 0.0
    %881 = vmatpush.msra.mxu0 %v838
    %882 = vmatmul.f32.gmra.mxu0 %v831
    %v883 = vpop.f32.mrf.mxu0
    %v884 = vadd.f32 0.0, %v883
    %885 = vdwg.mxu0
    %886 = vmatpush.msra.mxu0 0.0
    %887 = vmatpush.msra.mxu0 0.0
    %888 = vmatpush.msra.mxu0 0.0
    %889 = vmatpush.msra.mxu0 0.0
    %890 = vmatpush.msra.mxu0 0.0
    %891 = vmatpush.msra.mxu0 0.0
    %892 = vmatpush.msra.mxu0 0.0
    %893 = vmatpush.msra.mxu0 0.0
    %894 = vmatpush.msra.mxu0 0.0
    %895 = vmatpush.msra.mxu0 0.0
    %896 = vmatpush.msra.mxu0 0.0
    %897 = vmatpush.msra.mxu0 0.0
    %898 = vmatpush.msra.mxu0 0.0
    %899 = vmatpush.msra.mxu0 0.0
    %900 = vmatpush.msra.mxu0 0.0
    %901 = vmatpush.msra.mxu0 %v841
    %902 = vmatmul.f32.gmra.mxu0 %v831
    %v903 = vpop.f32.mrf.mxu0
    %v904 = vadd.f32 0.0, %v903
    %905 = vdwg.mxu0
    %906 = vmatpush.msra.mxu0 0.0
    %907 = vmatpush.msra.mxu0 0.0
    %908 = vmatpush.msra.mxu0 0.0
    %909 = vmatpush.msra.mxu0 0.0
    %910 = vmatpush.msra.mxu0 0.0
    %911 = vmatpush.msra.mxu0 0.0
    %912 = vmatpush.msra.mxu0 0.0
    %913 = vmatpush.msra.mxu0 0.0
    %914 = vmatpush.msra.mxu0 0.0
    %915 = vmatpush.msra.mxu0 0.0
    %916 = vmatpush.msra.mxu0 0.0
    %917 = vmatpush.msra.mxu0 0.0
    %918 = vmatpush.msra.mxu0 0.0
    %919 = vmatpush.msra.mxu0 0.0
    %920 = vmatpush.msra.mxu0 0.0
    %921 = vmatpush.msra.mxu0 %v844
    %922 = vmatmul.f32.gmra.mxu0 %v831
    %v923 = vpop.f32.mrf.mxu0
    %v924 = vadd.f32 0.0, %v923
    %925 = vdwg.mxu0
    %v926 = vsub.f32 %v728, %v864
    %v927 = vsub.f32 %v748, %v884
    %v928 = vsub.f32 %v768, %v904
    %v929 = vsub.f32 %v788, %v924
    %v930 = vmul.f32 %v926, 1.442695
    %v931 = vpow.pop %v930
    %v932 = vmul.f32 %v927, 1.442695
    %v933 = vpow.pop %v932
    %v934 = vmul.f32 %v928, 1.442695
    %v935 = vpow.pop %v934
    %v936 = vmul.f32 %v929, 1.442695
    %v937 = vpow.pop %v936
    %v938 = vsel %vm790, %v931, 0.0
    %939 = vadd.xlane.f32.xlu0 %v938
    %v940 = vpop.xlane.xlu0 %939
    %942 = vrot.lane.b32.xlu0 %v931, 64
    %v943 = vpop.permute.xlu0 %942
    %v945 = vsel %vm790, %v943, 0.0
    %946 = vadd.xlane.f32.xlu0 %v945
    %v947 = vpop.xlane.xlu0 %946
    %v948 = vsel %vm790, %v933, 0.0
    %949 = vadd.xlane.f32.xlu0 %v948
    %v950 = vpop.xlane.xlu0 %949
    %952 = vrot.lane.b32.xlu0 %v933, 64
    %v953 = vpop.permute.xlu0 %952
    %v955 = vsel %vm790, %v953, 0.0
    %956 = vadd.xlane.f32.xlu0 %v955
    %v957 = vpop.xlane.xlu0 %956
    %v958 = vsel %vm790, %v935, 0.0
    %959 = vadd.xlane.f32.xlu0 %v958
    %v960 = vpop.xlane.xlu0 %959
    %962 = vrot.lane.b32.xlu0 %v935, 64
    %v963 = vpop.permute.xlu0 %962
    %v965 = vsel %vm790, %v963, 0.0
    %966 = vadd.xlane.f32.xlu0 %v965
    %v967 = vpop.xlane.xlu0 %966
    %v968 = vsel %vm790, %v937, 0.0
    %969 = vadd.xlane.f32.xlu0 %v968
    %v970 = vpop.xlane.xlu0 %969
    %v971 = vsel %vm813, %v940, %v947
    %v972 = vsel %vm815, %v971, %v950
    %v973 = vsel %vm817, %v972, %v957
    %v974 = vsel %vm819, %v973, %v960
    %v975 = vsel %vm821, %v974, %v967
    %v976 = vsel %vm823, %v975, %v970
    %v977 = vrcp.pop %v976
    %v978 = vmul.f32 %v976, %v977
    %v979 = vsub.f32 1.0, %v978
    %v980 = vmul.f32 %v977, %v979
    %v981 = vadd.f32 %v977, %v980
    %vm982 = vweird.f32 %v976
    %vm983 = vweird.f32 %v977
    %vm984 = vmor %vm982, %vm983
    %v985 = vsel %vm984, %v977, %v981
    %v986 = vand.u32 2147483647, %v976
    %vm987 = vcmp.eq.f32.partialorder %v986, 8.507059e+37
    %v988 = vand.u32 %v976, 2147483648
    %v989 = vor.u32 1.1754944e-38, %v988
    %v990 = vsel %vm987, %v989, %v985
    %v992 = vsel %vm829, %v990, 0
    %994 = vmatpush.msra.mxu0 0.0
    %995 = vmatpush.msra.mxu0 0.0
    %996 = vmatpush.msra.mxu0 0.0
    %997 = vmatpush.msra.mxu0 0.0
    %998 = vmatpush.msra.mxu0 0.0
    %999 = vmatpush.msra.mxu0 0.0
    %1000 = vmatpush.msra.mxu0 0.0
    %1001 = vmatpush.msra.mxu0 0.0
    %1002 = vmatpush.msra.mxu0 0.0
    %1003 = vmatpush.msra.mxu0 0.0
    %1004 = vmatpush.msra.mxu0 0.0
    %1005 = vmatpush.msra.mxu0 0.0
    %1006 = vmatpush.msra.mxu0 0.0
    %1007 = vmatpush.msra.mxu0 0.0
    %1008 = vmatpush.msra.mxu0 0.0
    %1009 = vmatpush.msra.mxu0 %v835
    %1010 = vmatmul.f32.gmra.mxu0 %v992
    %v1011 = vpop.f32.mrf.mxu0
    %v1012 = vadd.f32 0.0, %v1011
    %1013 = vdwg.mxu0
    %1014 = vmatpush.msra.mxu0 0.0
    %1015 = vmatpush.msra.mxu0 0.0
    %1016 = vmatpush.msra.mxu0 0.0
    %1017 = vmatpush.msra.mxu0 0.0
    %1018 = vmatpush.msra.mxu0 0.0
    %1019 = vmatpush.msra.mxu0 0.0
    %1020 = vmatpush.msra.mxu0 0.0
    %1021 = vmatpush.msra.mxu0 0.0
    %1022 = vmatpush.msra.mxu0 0.0
    %1023 = vmatpush.msra.mxu0 0.0
    %1024 = vmatpush.msra.mxu0 0.0
    %1025 = vmatpush.msra.mxu0 0.0
    %1026 = vmatpush.msra.mxu0 0.0
    %1027 = vmatpush.msra.mxu0 0.0
    %1028 = vmatpush.msra.mxu0 0.0
    %1029 = vmatpush.msra.mxu0 %v838
    %1030 = vmatmul.f32.gmra.mxu0 %v992
    %v1031 = vpop.f32.mrf.mxu0
    %v1032 = vadd.f32 0.0, %v1031
    %1033 = vdwg.mxu0
    %1034 = vmatpush.msra.mxu0 0.0
    %1035 = vmatpush.msra.mxu0 0.0
    %1036 = vmatpush.msra.mxu0 0.0
    %1037 = vmatpush.msra.mxu0 0.0
    %1038 = vmatpush.msra.mxu0 0.0
    %1039 = vmatpush.msra.mxu0 0.0
    %1040 = vmatpush.msra.mxu0 0.0
    %1041 = vmatpush.msra.mxu0 0.0
    %1042 = vmatpush.msra.mxu0 0.0
    %1043 = vmatpush.msra.mxu0 0.0
    %1044 = vmatpush.msra.mxu0 0.0
    %1045 = vmatpush.msra.mxu0 0.0
    %1046 = vmatpush.msra.mxu0 0.0
    %1047 = vmatpush.msra.mxu0 0.0
    %1048 = vmatpush.msra.mxu0 0.0
    %1049 = vmatpush.msra.mxu0 %v841
    %1050 = vmatmul.f32.gmra.mxu0 %v992
    %v1051 = vpop.f32.mrf.mxu0
    %v1052 = vadd.f32 0.0, %v1051
    %1053 = vdwg.mxu0
    %1054 = vmatpush.msra.mxu0 0.0
    %1055 = vmatpush.msra.mxu0 0.0
    %1056 = vmatpush.msra.mxu0 0.0
    %1057 = vmatpush.msra.mxu0 0.0
    %1058 = vmatpush.msra.mxu0 0.0
    %1059 = vmatpush.msra.mxu0 0.0
    %1060 = vmatpush.msra.mxu0 0.0
    %1061 = vmatpush.msra.mxu0 0.0
    %1062 = vmatpush.msra.mxu0 0.0
    %1063 = vmatpush.msra.mxu0 0.0
    %1064 = vmatpush.msra.mxu0 0.0
    %1065 = vmatpush.msra.mxu0 0.0
    %1066 = vmatpush.msra.mxu0 0.0
    %1067 = vmatpush.msra.mxu0 0.0
    %1068 = vmatpush.msra.mxu0 0.0
    %1069 = vmatpush.msra.mxu0 %v844
    %1070 = vmatmul.f32.gmra.mxu0 %v992
    %v1071 = vpop.f32.mrf.mxu0
    %v1072 = vadd.f32 0.0, %v1071
    %1073 = vdwg.mxu0
    %v1074 = vmul.f32 %v931, %v1012
    %v1075 = vmul.f32 %v933, %v1032
    %v1076 = vmul.f32 %v935, %v1052
    %v1077 = vmul.f32 %v937, %v1072
    %1078 = vst [vmem:[#allocation20] sm:$0xff] %v1074
    %1079 = vst [vmem:[#allocation20 + $0x8] sm:$0xff] %v1075
    %1080 = vst [vmem:[#allocation20 + $0x10] sm:$0xff] %v1076
    %1081 = vst.msk [vmem:[#allocation20 + $0x18] sm:$0xff] %vm790, %v1077
    // Predicated region
    $region106: #{tpu_custom_call.1} parent=1 // pred_check
      _
    $region107: #{tpu_custom_call.1} parent=1 // pred_check_branch
      %1083 = sbr.rel (0) target = $region109
    $region108: #{tpu_custom_call.1} parent=1 // pred_region
      %1085 = vsyncadd [#allocation4], 0
      %s1087 = sshll.u32 [#allocation20], 4
      %s1088 = int_to_ptr.vmem [resolvable:$true] %s1087
      %s1089 = sshll.u32 %s15, 4
      %s1090 = int_to_ptr.hbm [resolvable:$true] %s1089
      %1092 = dma.vmem_to_hbm [thread:$0]  %s1088, 512, %s1090, [#allocation4]
    $region109: #{tpu_custom_call.1} parent=1 // pred_fallthru
      _
    // Predicated region
    $region110: #{tpu_custom_call.1} parent=1 // pred_check
      _
    $region111: #{tpu_custom_call.1} parent=1 // pred_check_branch
      %1094 = sbr.rel (0) target = $region113
    $region112: #{tpu_custom_call.1} parent=1 // pred_region
      %1096 = dma.done [#allocation4], 512
    $region113: #{tpu_custom_call.1} parent=1 // pred_fallthru
      _
    %1097 = vsyncpa [#allocation3], 1
    %1098 = vsyncpa [#allocation6], 1
    %1099 = vsyncpa [#allocation9], 1
    %1100 = vsyncpa [#allocation12], 1
    %1101 = vsyncpa [#allocation15], 1
    %1102 = vsyncpa [#allocation18], 1
    %1103 = vsyncpa [#allocation4], 1

</llo_original>
